<compile_context>
chip_gen: v6e
topology: v6e:2x2x1
jax: 0.10.0
libtpu: 0.0.40
codegen_flags: <defaults>
</compile_context>

<pallas_src>
import math

import jax
import jax.numpy as jnp
from jax import lax
from jax.experimental import pallas as pl
from jax.experimental.pallas import tpu as pltpu

# ---- small synthetic "BERT" dims ----
B, T, H, V = 2, 8, 32, 128          # batch, seq, hidden, vocab
NH, HD, F = 2, 16, 64               # heads, head_dim, ffn
H3 = 3 * H
BT = B * T
MASK_TOKEN_ID = 103
TOPK_SAMPLE = 20                    # sample_multinomial_simple uses topk(20)
ATTN_SCALE = 1.0 / math.sqrt(HD)


# ---------------- in-kernel helpers ----------------

def _mm(a, w):
    """MXU matmul: bf16 operands (fast path on v5e/v6e/v7x MXUs), f32 accumulate."""
    return jnp.dot(a.astype(jnp.bfloat16), w.astype(jnp.bfloat16),
                   preferred_element_type=jnp.float32)


def _ln(x, g, b):
    mu = jnp.mean(x, axis=-1, keepdims=True)
    var = jnp.mean(jnp.square(x - mu), axis=-1, keepdims=True)
    return (x - mu) * lax.rsqrt(var + 1e-12) * g + b


def _gelu(y):
    # TODO(synk): HF BERT uses exact (erf) GELU; tanh approximation kept (erf has no
    # guaranteed Mosaic lowering) -- tiny logit drift vs the torch reference.
    return 0.5 * y * (1.0 + jnp.tanh(0.7978845608028654 * (y + 0.044715 * y * y * y)))


# ---------------- the single fused Pallas kernel ----------------

def _fused_mlm_kernel(
        ids_ref, bias_ref, reprow_ref, orig_ref, vmask_ref,
        word_emb_ref, pos_type_ref, emb_g_ref, emb_b_ref,
        wqkv_ref, bqkv_ref, wo_ref, bo_ref, ln1_g_ref, ln1_b_ref,
        wff1_ref, bff1_ref, wff2_ref, bff2_ref, ln2_g_ref, ln2_b_ref,
        mlm_w_ref, mlm_b_ref, mlm_g_ref, mlm_beta_ref,
        dec_wt_ref, dec_b_ref,
        o_ref):
    # ---- word-embedding lookup fused as an exact f32 one-hot matmul (BT, V) @ (V, H) ----
    ids = ids_ref[...]                                                   # (BT, 1) int32
    vocab_iota = lax.broadcasted_iota(jnp.int32, (BT, V), 1)
    onehot = (ids == vocab_iota).astype(jnp.float32)                    # (BT, V)
    x = jnp.dot(onehot, word_emb_ref[...], preferred_element_type=jnp.float32)
    x = _ln(x + pos_type_ref[...], emb_g_ref[...], emb_b_ref[...])      # (BT, H)

    # ---- fused QKV projection (Wq pre-scaled by 1/sqrt(HD) at init) ----
    qkv = _mm(x, wqkv_ref[...]) + bqkv_ref[...]                          # (BT, 3H)

    # ---- all attention heads in this single grid step (unrolled at trace time) ----
    bias = bias_ref[...]                                                 # (B, 1, T) additive mask
    attn_out = jnp.zeros((BT, H), jnp.float32)
    for h in range(NH):
        q = qkv[:, h * HD:(h + 1) * HD].reshape(B, T, HD)
        k = qkv[:, H + h * HD:H + (h + 1) * HD].reshape(B, T, HD)
        v = qkv[:, 2 * H + h * HD:2 * H + (h + 1) * HD].reshape(B, T, HD)
        s = jnp.einsum('bqd,bkd->bqk', q.astype(jnp.bfloat16), k.astype(jnp.bfloat16),
                       preferred_element_type=jnp.float32)               # (B, T, T)
        s = s + bias
        s = s - jnp.max(s, axis=-1, keepdims=True)
        p = jnp.exp(s)
        p = p * pl.reciprocal(jnp.sum(p, axis=-1, keepdims=True), approx=True)
        ctx = jnp.einsum('bqk,bkd->bqd', p.astype(jnp.bfloat16), v.astype(jnp.bfloat16),
                         preferred_element_type=jnp.float32)             # (B, T, HD)
        # output projection folded per head: concat_h(ctx_h) @ Wo == sum_h ctx_h @ Wo[h]
        attn_out = attn_out + _mm(ctx.reshape(BT, HD), wo_ref[h * HD:(h + 1) * HD, :])
    attn_out = attn_out + bo_ref[...]
    x = _ln(attn_out + x, ln1_g_ref[...], ln1_b_ref[...])

    # ---- FFN ----
    hmid = _gelu(_mm(x, wff1_ref[...]) + bff1_ref[...])
    ff = _mm(hmid, wff2_ref[...]) + bff2_ref[...]
    x = _ln(ff + x, ln2_g_ref[...], ln2_b_ref[...])

    # ---- MLM transform head ----
    hh = _gelu(_mm(x, mlm_w_ref[...]) + mlm_b_ref[...])
    hh = _ln(hh, mlm_g_ref[...], mlm_beta_ref[...])                      # (BT, H)

    # ---- decode only the rep rows: in-kernel one-hot row select (B, BT) @ (BT, H) ----
    row_iota = lax.broadcasted_iota(jnp.int32, (B, BT), 1)
    rep_sel = (reprow_ref[...] == row_iota).astype(jnp.float32)          # (B, BT)
    rep_hh = jnp.dot(rep_sel, hh, preferred_element_type=jnp.float32)    # (B, H)

    # ---- tied decoder (pre-transposed) + vocab mask + origin-token suppression ----
    logits = _mm(rep_hh, dec_wt_ref[...]) + dec_b_ref[...]               # (B, V)
    logits = logits + (1.0 - vmask_ref[...]) * -10000.0
    voc_iota = lax.broadcasted_iota(jnp.int32, (B, V), 1)
    logits = jnp.where(orig_ref[...] == voc_iota, jnp.float32(-10000.0), logits)
    o_ref[...] = logits


def _full_spec(shape):
    nd = len(shape)
    return pl.BlockSpec(shape, lambda i, _nd=nd: (0,) * _nd)


def fused_rep_logits(p, masked_ids_col, attn_bias, rep_rows, orig_col, vocab_mask):
    args = (masked_ids_col, attn_bias, rep_rows, orig_col, vocab_mask,
            p["word_emb"], p["pos_type_emb"], p["emb_ln_g"], p["emb_ln_b"],
            p["wqkv"], p["bqkv"], p["wo"], p["bo"], p["ln1_g"], p["ln1_b"],
            p["wff1"], p["bff1"], p["wff2"], p["bff2"], p["ln2_g"], p["ln2_b"],
            p["mlm_w"], p["mlm_b"], p["mlm_ln_g"], p["mlm_ln_b"],
            p["dec_wt"], p["dec_b"])
    return pl.pallas_call(
        _fused_mlm_kernel,
        out_shape=jax.ShapeDtypeStruct((B, V), jnp.float32),
        grid=(1,),
        in_specs=[_full_spec(a.shape) for a in args],
        out_specs=pl.BlockSpec((B, V), lambda i: (0, 0)),
        compiler_params=pltpu.CompilerParams(dimension_semantics=("parallel",)),
    )(*args)


# ---------------- synthetic BERT-MLM params (deterministic init) ----------------

def init_params(key):
    def nrm(k, shape, scale=0.02):
        return scale * jax.random.normal(k, shape, dtype=jnp.float32)

    def w16(x):  # matmul weights stored bf16 -> half the HBM->VMEM DMA traffic
        return x.astype(jnp.bfloat16)

    ks = jax.random.split(key, 12)
    zH = jnp.zeros((1, H), jnp.float32)
    oH = jnp.ones((1, H), jnp.float32)
    p = {}
    word_emb = nrm(ks[0], (V, H))
    pos_emb = nrm(ks[1], (T, H))
    type_emb = nrm(ks[2], (2, H))
    p["word_emb"] = word_emb                                   # f32: exact in-kernel one-hot gather
    p["pos_type_emb"] = jnp.tile(pos_emb + type_emb[0][None, :], (B, 1))   # (BT, H) constant
    p["emb_ln_g"], p["emb_ln_b"] = oH, zH
    # Attention score scaling 1/sqrt(HD) folded into the Q projection at init.
    wq = nrm(ks[3], (H, H)) * ATTN_SCALE
    wk, wv = nrm(ks[4], (H, H)), nrm(ks[5], (H, H))
    p["wqkv"] = w16(jnp.concatenate([wq, wk, wv], axis=1))     # fused QKV (H, 3H)
    p["bqkv"] = jnp.zeros((1, H3), jnp.float32)
    p["wo"] = w16(nrm(ks[6], (H, H))); p["bo"] = zH
    p["ln1_g"], p["ln1_b"] = oH, zH
    p["wff1"] = w16(nrm(ks[7], (H, F))); p["bff1"] = jnp.zeros((1, F), jnp.float32)
    p["wff2"] = w16(nrm(ks[8], (F, H))); p["bff2"] = zH
    p["ln2_g"], p["ln2_b"] = oH, zH
    p["mlm_w"] = w16(nrm(ks[9], (H, H))); p["mlm_b"] = zH
    p["mlm_ln_g"], p["mlm_ln_b"] = oH, zH
    p["dec_wt"] = w16(word_emb.T)                              # pre-transposed tied decoder (H, V)
    p["dec_b"] = jnp.zeros((1, V), jnp.float32)
    return p


# ---------------- forward (random strategy) ----------------

def replace_model_forward(p, vocab_mask, input_ids, attention_mask, rep_ids, rng,
                          template_token_ids=None):
    bidx = jnp.arange(B)
    origin_ids = input_ids[bidx, rep_ids]
    masked_input_ids = input_ids.at[bidx, rep_ids].set(MASK_TOKEN_ID)

    # Layout plumbing only (index columns + additive attention bias); all compute is in the kernel.
    masked_ids_col = masked_input_ids.reshape(BT, 1).astype(jnp.int32)
    attn_bias = ((1.0 - attention_mask.astype(jnp.float32)) * -10000.0).reshape(B, 1, T)
    rep_rows = (bidx * T + rep_ids).reshape(B, 1).astype(jnp.int32)
    orig_col = origin_ids.reshape(B, 1).astype(jnp.int32)

    rep_logits = fused_rep_logits(p, masked_ids_col, attn_bias, rep_rows, orig_col, vocab_mask)

    # strategy == 'random' (default) -> sample_multinomial_simple on the rep rows only.
    topk_logits, topk_ids = lax.top_k(rep_logits, TOPK_SAMPLE)
    # torch.multinomial(softmax(topk_logits), 10, replacement=True)[:, 0] ==
    # one categorical draw per row (RNG stream differs from torch).
    # TODO(synk): top-k + categorical sampling kept in plain JAX (no clean Pallas topk).
    idx = jax.random.categorical(rng, topk_logits, axis=-1)               # (B,)
    rep_token_ids = topk_ids[bidx, idx]

    base = input_ids if template_token_ids is None else template_token_ids
    return base.at[bidx, rep_ids].set(rep_token_ids)


if __name__ == "__main__":
    key = jax.random.PRNGKey(0)
    kp, kin, krep, ksample = jax.random.split(key, 4)
    params = init_params(kp)

    # Synthetic stand-in for the tokenizer-derived vocab mask (unexpect_vocab).
    # TODO(synk): real vocab_mask / subword_mask / sim_words need a tokenizer; not reproducible here.
    vocab_mask = jnp.ones((1, V), jnp.float32).at[0, :6].set(0.0)

    input_ids = jax.random.randint(kin, (B, T), 6, V, dtype=jnp.int32)
    attention_mask = jnp.ones((B, T), jnp.float32).at[1, T - 1].set(0.0)
    rep_ids = jax.random.randint(krep, (B,), 1, T - 1, dtype=jnp.int32)

    @jax.jit
    def run(input_ids, attention_mask, rep_ids, rng):
        return replace_model_forward(params, vocab_mask, input_ids, attention_mask,
                                     rep_ids, rng)

    out = run(input_ids, attention_mask, rep_ids, ksample)
    out = jax.block_until_ready(out)
    assert out.shape == (B, T) and out.dtype == jnp.int32
    print("KERNEL_OK")
</pallas_src>

<mosaic_0001>
module attributes {stable_mosaic.version = 11 : i64} {
  func.func @_fused_mlm_kernel(%arg0: i32, %arg1: memref<16x1xi32, #tpu.memory_space<vmem>>, %arg2: memref<2x1x8xf32, #tpu.memory_space<vmem>>, %arg3: memref<2x1xi32, #tpu.memory_space<vmem>>, %arg4: memref<2x1xi32, #tpu.memory_space<vmem>>, %arg5: memref<1x128xf32, #tpu.memory_space<vmem>>, %arg6: memref<128x32xf32, #tpu.memory_space<vmem>>, %arg7: memref<16x32xf32, #tpu.memory_space<vmem>>, %arg8: memref<1x32xf32, #tpu.memory_space<vmem>>, %arg9: memref<1x32xf32, #tpu.memory_space<vmem>>, %arg10: memref<32x96xbf16, #tpu.memory_space<vmem>>, %arg11: memref<1x96xf32, #tpu.memory_space<vmem>>, %arg12: memref<32x32xbf16, #tpu.memory_space<vmem>>, %arg13: memref<1x32xf32, #tpu.memory_space<vmem>>, %arg14: memref<1x32xf32, #tpu.memory_space<vmem>>, %arg15: memref<1x32xf32, #tpu.memory_space<vmem>>, %arg16: memref<32x64xbf16, #tpu.memory_space<vmem>>, %arg17: memref<1x64xf32, #tpu.memory_space<vmem>>, %arg18: memref<64x32xbf16, #tpu.memory_space<vmem>>, %arg19: memref<1x32xf32, #tpu.memory_space<vmem>>, %arg20: memref<1x32xf32, #tpu.memory_space<vmem>>, %arg21: memref<1x32xf32, #tpu.memory_space<vmem>>, %arg22: memref<32x32xbf16, #tpu.memory_space<vmem>>, %arg23: memref<1x32xf32, #tpu.memory_space<vmem>>, %arg24: memref<1x32xf32, #tpu.memory_space<vmem>>, %arg25: memref<1x32xf32, #tpu.memory_space<vmem>>, %arg26: memref<32x128xbf16, #tpu.memory_space<vmem>>, %arg27: memref<1x128xf32, #tpu.memory_space<vmem>>, %arg28: memref<2x128xf32, #tpu.memory_space<vmem>>) attributes {dimension_semantics = [#tpu.dimension_semantics<parallel>], iteration_bounds = array<i64: 1>, scalar_prefetch = 0 : i64, scratch_operands = 0 : i64, tpu.core_type = #tpu.core_type<tc>, window_params = [{pipeline_mode = #tpu.pipeline_mode<synchronous>, transform_indices = @transform_0, window_bounds = array<i64: 16, 1>}, {pipeline_mode = #tpu.pipeline_mode<synchronous>, transform_indices = @transform_1, window_bounds = array<i64: 2, 1, 8>}, {pipeline_mode = #tpu.pipeline_mode<synchronous>, transform_indices = @transform_2, window_bounds = array<i64: 2, 1>}, {pipeline_mode = #tpu.pipeline_mode<synchronous>, transform_indices = @transform_3, window_bounds = array<i64: 2, 1>}, {pipeline_mode = #tpu.pipeline_mode<synchronous>, transform_indices = @transform_4, window_bounds = array<i64: 1, 128>}, {pipeline_mode = #tpu.pipeline_mode<synchronous>, transform_indices = @transform_5, window_bounds = array<i64: 128, 32>}, {pipeline_mode = #tpu.pipeline_mode<synchronous>, transform_indices = @transform_6, window_bounds = array<i64: 16, 32>}, {pipeline_mode = #tpu.pipeline_mode<synchronous>, transform_indices = @transform_7, window_bounds = array<i64: 1, 32>}, {pipeline_mode = #tpu.pipeline_mode<synchronous>, transform_indices = @transform_8, window_bounds = array<i64: 1, 32>}, {pipeline_mode = #tpu.pipeline_mode<synchronous>, transform_indices = @transform_9, window_bounds = array<i64: 32, 96>}, {pipeline_mode = #tpu.pipeline_mode<synchronous>, transform_indices = @transform_10, window_bounds = array<i64: 1, 96>}, {pipeline_mode = #tpu.pipeline_mode<synchronous>, transform_indices = @transform_11, window_bounds = array<i64: 32, 32>}, {pipeline_mode = #tpu.pipeline_mode<synchronous>, transform_indices = @transform_12, window_bounds = array<i64: 1, 32>}, {pipeline_mode = #tpu.pipeline_mode<synchronous>, transform_indices = @transform_13, window_bounds = array<i64: 1, 32>}, {pipeline_mode = #tpu.pipeline_mode<synchronous>, transform_indices = @transform_14, window_bounds = array<i64: 1, 32>}, {pipeline_mode = #tpu.pipeline_mode<synchronous>, transform_indices = @transform_15, window_bounds = array<i64: 32, 64>}, {pipeline_mode = #tpu.pipeline_mode<synchronous>, transform_indices = @transform_16, window_bounds = array<i64: 1, 64>}, {pipeline_mode = #tpu.pipeline_mode<synchronous>, transform_indices = @transform_17, window_bounds = array<i64: 64, 32>}, {pipeline_mode = #tpu.pipeline_mode<synchronous>, transform_indices = @transform_18, window_bounds = array<i64: 1, 32>}, {pipeline_mode = #tpu.pipeline_mode<synchronous>, transform_indices = @transform_19, window_bounds = array<i64: 1, 32>}, {pipeline_mode = #tpu.pipeline_mode<synchronous>, transform_indices = @transform_20, window_bounds = array<i64: 1, 32>}, {pipeline_mode = #tpu.pipeline_mode<synchronous>, transform_indices = @transform_21, window_bounds = array<i64: 32, 32>}, {pipeline_mode = #tpu.pipeline_mode<synchronous>, transform_indices = @transform_22, window_bounds = array<i64: 1, 32>}, {pipeline_mode = #tpu.pipeline_mode<synchronous>, transform_indices = @transform_23, window_bounds = array<i64: 1, 32>}, {pipeline_mode = #tpu.pipeline_mode<synchronous>, transform_indices = @transform_24, window_bounds = array<i64: 1, 32>}, {pipeline_mode = #tpu.pipeline_mode<synchronous>, transform_indices = @transform_25, window_bounds = array<i64: 32, 128>}, {pipeline_mode = #tpu.pipeline_mode<synchronous>, transform_indices = @transform_26, window_bounds = array<i64: 1, 128>}, {pipeline_mode = #tpu.pipeline_mode<synchronous>, transform_indices = @transform_27, window_bounds = array<i64: 2, 128>}]} {
    %c0 = arith.constant 0 : index
    %c0_0 = arith.constant 0 : index
    %0 = vector.load %arg1[%c0, %c0_0] : memref<16x1xi32, #tpu.memory_space<vmem>>, vector<16x1xi32>
    %1 = tpu.iota {dimensions = array<i32: 1>} : vector<16x128xi32>
    %2 = vector.broadcast %0 : vector<16x1xi32> to vector<16x128xi32>
    %3 = arith.cmpi eq, %2, %1 : vector<16x128xi32>
    %4 = arith.extui %3 : vector<16x128xi1> to vector<16x128xi32>
    %5 = arith.sitofp %4 : vector<16x128xi32> to vector<16x128xf32>
    %c0_1 = arith.constant 0 : index
    %c0_2 = arith.constant 0 : index
    %6 = vector.load %arg6[%c0_1, %c0_2] : memref<128x32xf32, #tpu.memory_space<vmem>>, vector<128x32xf32>
    %cst = arith.constant dense<0.000000e+00> : vector<16x32xf32>
    %7 = tpu.matmul %5, %6, %cst {dimension_numbers = #tpu.dot_dimension_numbers<[1], [0], [0], [1], [0, 0, 1, 1], [], []>} : vector<16x128xf32>, vector<128x32xf32>, vector<16x32xf32> -> vector<16x32xf32>
    %c0_3 = arith.constant 0 : index
    %c0_4 = arith.constant 0 : index
    %8 = vector.load %arg7[%c0_3, %c0_4] : memref<16x32xf32, #tpu.memory_space<vmem>>, vector<16x32xf32>
    %9 = arith.addf %7, %8 : vector<16x32xf32>
    %c0_5 = arith.constant 0 : index
    %c0_6 = arith.constant 0 : index
    %10 = vector.load %arg8[%c0_5, %c0_6] : memref<1x32xf32, #tpu.memory_space<vmem>>, vector<1x32xf32>
    %c0_7 = arith.constant 0 : index
    %c0_8 = arith.constant 0 : index
    %11 = vector.load %arg9[%c0_7, %c0_8] : memref<1x32xf32, #tpu.memory_space<vmem>>, vector<1x32xf32>
    %cst_9 = arith.constant dense<0.000000e+00> : vector<16xf32>
    %12 = vector.multi_reduction <add>, %9, %cst_9 [1] : vector<16x32xf32> to vector<16xf32>
    %13 = vector.shape_cast %12 : vector<16xf32> to vector<16x1xf32>
    %cst_10 = arith.constant 3.200000e+01 : f32
    %14 = vector.broadcast %cst_10 : f32 to vector<16x1xf32>
    %15 = arith.divf %13, %14 : vector<16x1xf32>
    %16 = vector.broadcast %15 : vector<16x1xf32> to vector<16x32xf32>
    %17 = arith.subf %9, %16 : vector<16x32xf32>
    %18 = arith.mulf %17, %17 : vector<16x32xf32>
    %cst_11 = arith.constant dense<0.000000e+00> : vector<16xf32>
    %19 = vector.multi_reduction <add>, %18, %cst_11 [1] : vector<16x32xf32> to vector<16xf32>
    %20 = vector.shape_cast %19 : vector<16xf32> to vector<16x1xf32>
    %cst_12 = arith.constant 3.200000e+01 : f32
    %21 = vector.broadcast %cst_12 : f32 to vector<16x1xf32>
    %22 = arith.divf %20, %21 : vector<16x1xf32>
    %23 = vector.broadcast %15 : vector<16x1xf32> to vector<16x32xf32>
    %24 = arith.subf %9, %23 : vector<16x32xf32>
    %cst_13 = arith.constant 9.99999996E-13 : f32
    %25 = vector.broadcast %cst_13 : f32 to vector<16x1xf32>
    %26 = arith.addf %22, %25 : vector<16x1xf32>
    %27 = math.rsqrt %26 : vector<16x1xf32>
    %28 = vector.broadcast %27 : vector<16x1xf32> to vector<16x32xf32>
    %29 = arith.mulf %24, %28 : vector<16x32xf32>
    %30 = vector.broadcast %10 : vector<1x32xf32> to vector<16x32xf32>
    %31 = arith.mulf %29, %30 : vector<16x32xf32>
    %32 = vector.broadcast %11 : vector<1x32xf32> to vector<16x32xf32>
    %33 = arith.addf %31, %32 : vector<16x32xf32>
    %c0_14 = arith.constant 0 : index
    %c0_15 = arith.constant 0 : index
    %34 = vector.load %arg10[%c0_14, %c0_15] : memref<32x96xbf16, #tpu.memory_space<vmem>>, vector<32x96xbf16>
    %35 = arith.truncf %33 : vector<16x32xf32> to vector<16x32xbf16>
    %cst_16 = arith.constant dense<0.000000e+00> : vector<16x96xf32>
    %36 = tpu.matmul %35, %34, %cst_16 {dimension_numbers = #tpu.dot_dimension_numbers<[1], [0], [0], [1], [0, 0, 1, 1], [], []>} : vector<16x32xbf16>, vector<32x96xbf16>, vector<16x96xf32> -> vector<16x96xf32>
    %c0_17 = arith.constant 0 : index
    %c0_18 = arith.constant 0 : index
    %37 = vector.load %arg11[%c0_17, %c0_18] : memref<1x96xf32, #tpu.memory_space<vmem>>, vector<1x96xf32>
    %38 = vector.broadcast %37 : vector<1x96xf32> to vector<16x96xf32>
    %39 = arith.addf %36, %38 : vector<16x96xf32>
    %c0_19 = arith.constant 0 : index
    %c0_20 = arith.constant 0 : index
    %c0_21 = arith.constant 0 : index
    %40 = vector.load %arg2[%c0_19, %c0_20, %c0_21] : memref<2x1x8xf32, #tpu.memory_space<vmem>>, vector<2x1x8xf32>
    %cst_22 = arith.constant 0.000000e+00 : f32
    %41 = vector.broadcast %cst_22 : f32 to vector<16x32xf32>
    %42 = vector.extract_strided_slice %39 {offsets = [0, 0], sizes = [16, 16], strides = [1, 1]} : vector<16x96xf32> to vector<16x16xf32>
    %43 = vector.shape_cast %42 : vector<16x16xf32> to vector<2x8x16xf32>
    %44 = vector.extract_strided_slice %39 {offsets = [0, 32], sizes = [16, 16], strides = [1, 1]} : vector<16x96xf32> to vector<16x16xf32>
    %45 = vector.shape_cast %44 : vector<16x16xf32> to vector<2x8x16xf32>
    %46 = vector.extract_strided_slice %39 {offsets = [0, 64], sizes = [16, 16], strides = [1, 1]} : vector<16x96xf32> to vector<16x16xf32>
    %47 = vector.shape_cast %46 : vector<16x16xf32> to vector<2x8x16xf32>
    %48 = arith.truncf %43 : vector<2x8x16xf32> to vector<2x8x16xbf16>
    %49 = arith.truncf %45 : vector<2x8x16xf32> to vector<2x8x16xbf16>
    "tpu.trace_start"() <{level = 10 : i32, message = "bqd,bkd->bqk"}> : () -> ()
    %cst_23 = arith.constant dense<0.000000e+00> : vector<2x8x8xf32>
    %50 = tpu.matmul %48, %49, %cst_23 {dimension_numbers = #tpu.dot_dimension_numbers<[2], [2], [1], [1], [0, 0, 0, 1, 1, 1], [0], [0]>} : vector<2x8x16xbf16>, vector<2x8x16xbf16>, vector<2x8x8xf32> -> vector<2x8x8xf32>
    "tpu.trace_stop"() : () -> ()
    %51 = vector.broadcast %40 : vector<2x1x8xf32> to vector<2x8x8xf32>
    %52 = arith.addf %50, %51 : vector<2x8x8xf32>
    %cst_24 = arith.constant dense<0xFF800000> : vector<2x8xf32>
    %53 = vector.multi_reduction <maximumf>, %52, %cst_24 [2] : vector<2x8x8xf32> to vector<2x8xf32>
    %54 = vector.shape_cast %53 : vector<2x8xf32> to vector<2x8x1xf32>
    %55 = vector.broadcast %54 : vector<2x8x1xf32> to vector<2x8x8xf32>
    %56 = arith.subf %52, %55 : vector<2x8x8xf32>
    %57 = math.exp %56 : vector<2x8x8xf32>
    %cst_25 = arith.constant dense<0.000000e+00> : vector<2x8xf32>
    %58 = vector.multi_reduction <add>, %57, %cst_25 [2] : vector<2x8x8xf32> to vector<2x8xf32>
    %59 = vector.shape_cast %58 : vector<2x8xf32> to vector<2x8x1xf32>
    %60 = tpu.reciprocal %59 {approx = true} : vector<2x8x1xf32> -> vector<2x8x1xf32>
    %61 = vector.broadcast %60 : vector<2x8x1xf32> to vector<2x8x8xf32>
    %62 = arith.mulf %57, %61 : vector<2x8x8xf32>
    %63 = arith.truncf %62 : vector<2x8x8xf32> to vector<2x8x8xbf16>
    %64 = arith.truncf %47 : vector<2x8x16xf32> to vector<2x8x16xbf16>
    "tpu.trace_start"() <{level = 10 : i32, message = "bqk,bkd->bqd"}> : () -> ()
    %cst_26 = arith.constant dense<0.000000e+00> : vector<2x8x16xf32>
    %65 = tpu.matmul %63, %64, %cst_26 {dimension_numbers = #tpu.dot_dimension_numbers<[2], [1], [1], [2], [0, 0, 0, 1, 1, 2], [0], [0]>} : vector<2x8x8xbf16>, vector<2x8x16xbf16>, vector<2x8x16xf32> -> vector<2x8x16xf32>
    "tpu.trace_stop"() : () -> ()
    %66 = vector.shape_cast %65 : vector<2x8x16xf32> to vector<16x16xf32>
    %c0_27 = arith.constant 0 : index
    %c0_28 = arith.constant 0 : index
    %67 = vector.load %arg12[%c0_27, %c0_28] : memref<32x32xbf16, #tpu.memory_space<vmem>>, vector<16x32xbf16>
    %68 = arith.truncf %66 : vector<16x16xf32> to vector<16x16xbf16>
    %cst_29 = arith.constant dense<0.000000e+00> : vector<16x32xf32>
    %69 = tpu.matmul %68, %67, %cst_29 {dimension_numbers = #tpu.dot_dimension_numbers<[1], [0], [0], [1], [0, 0, 1, 1], [], []>} : vector<16x16xbf16>, vector<16x32xbf16>, vector<16x32xf32> -> vector<16x32xf32>
    %70 = arith.addf %41, %69 : vector<16x32xf32>
    %71 = vector.extract_strided_slice %39 {offsets = [0, 16], sizes = [16, 16], strides = [1, 1]} : vector<16x96xf32> to vector<16x16xf32>
    %72 = vector.shape_cast %71 : vector<16x16xf32> to vector<2x8x16xf32>
    %73 = vector.extract_strided_slice %39 {offsets = [0, 48], sizes = [16, 16], strides = [1, 1]} : vector<16x96xf32> to vector<16x16xf32>
    %74 = vector.shape_cast %73 : vector<16x16xf32> to vector<2x8x16xf32>
    %75 = vector.extract_strided_slice %39 {offsets = [0, 80], sizes = [16, 16], strides = [1, 1]} : vector<16x96xf32> to vector<16x16xf32>
    %76 = vector.shape_cast %75 : vector<16x16xf32> to vector<2x8x16xf32>
    %77 = arith.truncf %72 : vector<2x8x16xf32> to vector<2x8x16xbf16>
    %78 = arith.truncf %74 : vector<2x8x16xf32> to vector<2x8x16xbf16>
    "tpu.trace_start"() <{level = 10 : i32, message = "bqd,bkd->bqk"}> : () -> ()
    %cst_30 = arith.constant dense<0.000000e+00> : vector<2x8x8xf32>
    %79 = tpu.matmul %77, %78, %cst_30 {dimension_numbers = #tpu.dot_dimension_numbers<[2], [2], [1], [1], [0, 0, 0, 1, 1, 1], [0], [0]>} : vector<2x8x16xbf16>, vector<2x8x16xbf16>, vector<2x8x8xf32> -> vector<2x8x8xf32>
    "tpu.trace_stop"() : () -> ()
    %80 = vector.broadcast %40 : vector<2x1x8xf32> to vector<2x8x8xf32>
    %81 = arith.addf %79, %80 : vector<2x8x8xf32>
    %cst_31 = arith.constant dense<0xFF800000> : vector<2x8xf32>
    %82 = vector.multi_reduction <maximumf>, %81, %cst_31 [2] : vector<2x8x8xf32> to vector<2x8xf32>
    %83 = vector.shape_cast %82 : vector<2x8xf32> to vector<2x8x1xf32>
    %84 = vector.broadcast %83 : vector<2x8x1xf32> to vector<2x8x8xf32>
    %85 = arith.subf %81, %84 : vector<2x8x8xf32>
    %86 = math.exp %85 : vector<2x8x8xf32>
    %cst_32 = arith.constant dense<0.000000e+00> : vector<2x8xf32>
    %87 = vector.multi_reduction <add>, %86, %cst_32 [2] : vector<2x8x8xf32> to vector<2x8xf32>
    %88 = vector.shape_cast %87 : vector<2x8xf32> to vector<2x8x1xf32>
    %89 = tpu.reciprocal %88 {approx = true} : vector<2x8x1xf32> -> vector<2x8x1xf32>
    %90 = vector.broadcast %89 : vector<2x8x1xf32> to vector<2x8x8xf32>
    %91 = arith.mulf %86, %90 : vector<2x8x8xf32>
    %92 = arith.truncf %91 : vector<2x8x8xf32> to vector<2x8x8xbf16>
    %93 = arith.truncf %76 : vector<2x8x16xf32> to vector<2x8x16xbf16>
    "tpu.trace_start"() <{level = 10 : i32, message = "bqk,bkd->bqd"}> : () -> ()
    %cst_33 = arith.constant dense<0.000000e+00> : vector<2x8x16xf32>
    %94 = tpu.matmul %92, %93, %cst_33 {dimension_numbers = #tpu.dot_dimension_numbers<[2], [1], [1], [2], [0, 0, 0, 1, 1, 2], [0], [0]>} : vector<2x8x8xbf16>, vector<2x8x16xbf16>, vector<2x8x16xf32> -> vector<2x8x16xf32>
    "tpu.trace_stop"() : () -> ()
    %95 = vector.shape_cast %94 : vector<2x8x16xf32> to vector<16x16xf32>
    %c16 = arith.constant 16 : index
    %c0_34 = arith.constant 0 : index
    %96 = vector.load %arg12[%c16, %c0_34] : memref<32x32xbf16, #tpu.memory_space<vmem>>, vector<16x32xbf16>
    %97 = arith.truncf %95 : vector<16x16xf32> to vector<16x16xbf16>
    %cst_35 = arith.constant dense<0.000000e+00> : vector<16x32xf32>
    %98 = tpu.matmul %97, %96, %cst_35 {dimension_numbers = #tpu.dot_dimension_numbers<[1], [0], [0], [1], [0, 0, 1, 1], [], []>} : vector<16x16xbf16>, vector<16x32xbf16>, vector<16x32xf32> -> vector<16x32xf32>
    %99 = arith.addf %70, %98 : vector<16x32xf32>
    %c0_36 = arith.constant 0 : index
    %c0_37 = arith.constant 0 : index
    %100 = vector.load %arg13[%c0_36, %c0_37] : memref<1x32xf32, #tpu.memory_space<vmem>>, vector<1x32xf32>
    %101 = vector.broadcast %100 : vector<1x32xf32> to vector<16x32xf32>
    %102 = arith.addf %99, %101 : vector<16x32xf32>
    %103 = arith.addf %102, %33 : vector<16x32xf32>
    %c0_38 = arith.constant 0 : index
    %c0_39 = arith.constant 0 : index
    %104 = vector.load %arg14[%c0_38, %c0_39] : memref<1x32xf32, #tpu.memory_space<vmem>>, vector<1x32xf32>
    %c0_40 = arith.constant 0 : index
    %c0_41 = arith.constant 0 : index
    %105 = vector.load %arg15[%c0_40, %c0_41] : memref<1x32xf32, #tpu.memory_space<vmem>>, vector<1x32xf32>
    %cst_42 = arith.constant dense<0.000000e+00> : vector<16xf32>
    %106 = vector.multi_reduction <add>, %103, %cst_42 [1] : vector<16x32xf32> to vector<16xf32>
    %107 = vector.shape_cast %106 : vector<16xf32> to vector<16x1xf32>
    %cst_43 = arith.constant 3.200000e+01 : f32
    %108 = vector.broadcast %cst_43 : f32 to vector<16x1xf32>
    %109 = arith.divf %107, %108 : vector<16x1xf32>
    %110 = vector.broadcast %109 : vector<16x1xf32> to vector<16x32xf32>
    %111 = arith.subf %103, %110 : vector<16x32xf32>
    %112 = arith.mulf %111, %111 : vector<16x32xf32>
    %cst_44 = arith.constant dense<0.000000e+00> : vector<16xf32>
    %113 = vector.multi_reduction <add>, %112, %cst_44 [1] : vector<16x32xf32> to vector<16xf32>
    %114 = vector.shape_cast %113 : vector<16xf32> to vector<16x1xf32>
    %cst_45 = arith.constant 3.200000e+01 : f32
    %115 = vector.broadcast %cst_45 : f32 to vector<16x1xf32>
    %116 = arith.divf %114, %115 : vector<16x1xf32>
    %117 = vector.broadcast %109 : vector<16x1xf32> to vector<16x32xf32>
    %118 = arith.subf %103, %117 : vector<16x32xf32>
    %cst_46 = arith.constant 9.99999996E-13 : f32
    %119 = vector.broadcast %cst_46 : f32 to vector<16x1xf32>
    %120 = arith.addf %116, %119 : vector<16x1xf32>
    %121 = math.rsqrt %120 : vector<16x1xf32>
    %122 = vector.broadcast %121 : vector<16x1xf32> to vector<16x32xf32>
    %123 = arith.mulf %118, %122 : vector<16x32xf32>
    %124 = vector.broadcast %104 : vector<1x32xf32> to vector<16x32xf32>
    %125 = arith.mulf %123, %124 : vector<16x32xf32>
    %126 = vector.broadcast %105 : vector<1x32xf32> to vector<16x32xf32>
    %127 = arith.addf %125, %126 : vector<16x32xf32>
    %c0_47 = arith.constant 0 : index
    %c0_48 = arith.constant 0 : index
    %128 = vector.load %arg16[%c0_47, %c0_48] : memref<32x64xbf16, #tpu.memory_space<vmem>>, vector<32x64xbf16>
    %129 = arith.truncf %127 : vector<16x32xf32> to vector<16x32xbf16>
    %cst_49 = arith.constant dense<0.000000e+00> : vector<16x64xf32>
    %130 = tpu.matmul %129, %128, %cst_49 {dimension_numbers = #tpu.dot_dimension_numbers<[1], [0], [0], [1], [0, 0, 1, 1], [], []>} : vector<16x32xbf16>, vector<32x64xbf16>, vector<16x64xf32> -> vector<16x64xf32>
    %c0_50 = arith.constant 0 : index
    %c0_51 = arith.constant 0 : index
    %131 = vector.load %arg17[%c0_50, %c0_51] : memref<1x64xf32, #tpu.memory_space<vmem>>, vector<1x64xf32>
    %132 = vector.broadcast %131 : vector<1x64xf32> to vector<16x64xf32>
    %133 = arith.addf %130, %132 : vector<16x64xf32>
    %cst_52 = arith.constant 5.000000e-01 : f32
    %134 = vector.broadcast %cst_52 : f32 to vector<16x64xf32>
    %135 = arith.mulf %134, %133 : vector<16x64xf32>
    %cst_53 = arith.constant 4.471500e-02 : f32
    %136 = vector.broadcast %cst_53 : f32 to vector<16x64xf32>
    %137 = arith.mulf %136, %133 : vector<16x64xf32>
    %138 = arith.mulf %137, %133 : vector<16x64xf32>
    %139 = arith.mulf %138, %133 : vector<16x64xf32>
    %140 = arith.addf %133, %139 : vector<16x64xf32>
    %cst_54 = arith.constant 0.797884583 : f32
    %141 = vector.broadcast %cst_54 : f32 to vector<16x64xf32>
    %142 = arith.mulf %141, %140 : vector<16x64xf32>
    %143 = math.tanh %142 : vector<16x64xf32>
    %cst_55 = arith.constant 1.000000e+00 : f32
    %144 = vector.broadcast %cst_55 : f32 to vector<16x64xf32>
    %145 = arith.addf %144, %143 : vector<16x64xf32>
    %146 = arith.mulf %135, %145 : vector<16x64xf32>
    %c0_56 = arith.constant 0 : index
    %c0_57 = arith.constant 0 : index
    %147 = vector.load %arg18[%c0_56, %c0_57] : memref<64x32xbf16, #tpu.memory_space<vmem>>, vector<64x32xbf16>
    %148 = arith.truncf %146 : vector<16x64xf32> to vector<16x64xbf16>
    %cst_58 = arith.constant dense<0.000000e+00> : vector<16x32xf32>
    %149 = tpu.matmul %148, %147, %cst_58 {dimension_numbers = #tpu.dot_dimension_numbers<[1], [0], [0], [1], [0, 0, 1, 1], [], []>} : vector<16x64xbf16>, vector<64x32xbf16>, vector<16x32xf32> -> vector<16x32xf32>
    %c0_59 = arith.constant 0 : index
    %c0_60 = arith.constant 0 : index
    %150 = vector.load %arg19[%c0_59, %c0_60] : memref<1x32xf32, #tpu.memory_space<vmem>>, vector<1x32xf32>
    %151 = vector.broadcast %150 : vector<1x32xf32> to vector<16x32xf32>
    %152 = arith.addf %149, %151 : vector<16x32xf32>
    %153 = arith.addf %152, %127 : vector<16x32xf32>
    %c0_61 = arith.constant 0 : index
    %c0_62 = arith.constant 0 : index
    %154 = vector.load %arg20[%c0_61, %c0_62] : memref<1x32xf32, #tpu.memory_space<vmem>>, vector<1x32xf32>
    %c0_63 = arith.constant 0 : index
    %c0_64 = arith.constant 0 : index
    %155 = vector.load %arg21[%c0_63, %c0_64] : memref<1x32xf32, #tpu.memory_space<vmem>>, vector<1x32xf32>
    %cst_65 = arith.constant dense<0.000000e+00> : vector<16xf32>
    %156 = vector.multi_reduction <add>, %153, %cst_65 [1] : vector<16x32xf32> to vector<16xf32>
    %157 = vector.shape_cast %156 : vector<16xf32> to vector<16x1xf32>
    %cst_66 = arith.constant 3.200000e+01 : f32
    %158 = vector.broadcast %cst_66 : f32 to vector<16x1xf32>
    %159 = arith.divf %157, %158 : vector<16x1xf32>
    %160 = vector.broadcast %159 : vector<16x1xf32> to vector<16x32xf32>
    %161 = arith.subf %153, %160 : vector<16x32xf32>
    %162 = arith.mulf %161, %161 : vector<16x32xf32>
    %cst_67 = arith.constant dense<0.000000e+00> : vector<16xf32>
    %163 = vector.multi_reduction <add>, %162, %cst_67 [1] : vector<16x32xf32> to vector<16xf32>
    %164 = vector.shape_cast %163 : vector<16xf32> to vector<16x1xf32>
    %cst_68 = arith.constant 3.200000e+01 : f32
    %165 = vector.broadcast %cst_68 : f32 to vector<16x1xf32>
    %166 = arith.divf %164, %165 : vector<16x1xf32>
    %167 = vector.broadcast %159 : vector<16x1xf32> to vector<16x32xf32>
    %168 = arith.subf %153, %167 : vector<16x32xf32>
    %cst_69 = arith.constant 9.99999996E-13 : f32
    %169 = vector.broadcast %cst_69 : f32 to vector<16x1xf32>
    %170 = arith.addf %166, %169 : vector<16x1xf32>
    %171 = math.rsqrt %170 : vector<16x1xf32>
    %172 = vector.broadcast %171 : vector<16x1xf32> to vector<16x32xf32>
    %173 = arith.mulf %168, %172 : vector<16x32xf32>
    %174 = vector.broadcast %154 : vector<1x32xf32> to vector<16x32xf32>
    %175 = arith.mulf %173, %174 : vector<16x32xf32>
    %176 = vector.broadcast %155 : vector<1x32xf32> to vector<16x32xf32>
    %177 = arith.addf %175, %176 : vector<16x32xf32>
    %c0_70 = arith.constant 0 : index
    %c0_71 = arith.constant 0 : index
    %178 = vector.load %arg22[%c0_70, %c0_71] : memref<32x32xbf16, #tpu.memory_space<vmem>>, vector<32x32xbf16>
    %179 = arith.truncf %177 : vector<16x32xf32> to vector<16x32xbf16>
    %cst_72 = arith.constant dense<0.000000e+00> : vector<16x32xf32>
    %180 = tpu.matmul %179, %178, %cst_72 {dimension_numbers = #tpu.dot_dimension_numbers<[1], [0], [0], [1], [0, 0, 1, 1], [], []>} : vector<16x32xbf16>, vector<32x32xbf16>, vector<16x32xf32> -> vector<16x32xf32>
    %c0_73 = arith.constant 0 : index
    %c0_74 = arith.constant 0 : index
    %181 = vector.load %arg23[%c0_73, %c0_74] : memref<1x32xf32, #tpu.memory_space<vmem>>, vector<1x32xf32>
    %182 = vector.broadcast %181 : vector<1x32xf32> to vector<16x32xf32>
    %183 = arith.addf %180, %182 : vector<16x32xf32>
    %cst_75 = arith.constant 5.000000e-01 : f32
    %184 = vector.broadcast %cst_75 : f32 to vector<16x32xf32>
    %185 = arith.mulf %184, %183 : vector<16x32xf32>
    %cst_76 = arith.constant 4.471500e-02 : f32
    %186 = vector.broadcast %cst_76 : f32 to vector<16x32xf32>
    %187 = arith.mulf %186, %183 : vector<16x32xf32>
    %188 = arith.mulf %187, %183 : vector<16x32xf32>
    %189 = arith.mulf %188, %183 : vector<16x32xf32>
    %190 = arith.addf %183, %189 : vector<16x32xf32>
    %cst_77 = arith.constant 0.797884583 : f32
    %191 = vector.broadcast %cst_77 : f32 to vector<16x32xf32>
    %192 = arith.mulf %191, %190 : vector<16x32xf32>
    %193 = math.tanh %192 : vector<16x32xf32>
    %cst_78 = arith.constant 1.000000e+00 : f32
    %194 = vector.broadcast %cst_78 : f32 to vector<16x32xf32>
    %195 = arith.addf %194, %193 : vector<16x32xf32>
    %196 = arith.mulf %185, %195 : vector<16x32xf32>
    %c0_79 = arith.constant 0 : index
    %c0_80 = arith.constant 0 : index
    %197 = vector.load %arg24[%c0_79, %c0_80] : memref<1x32xf32, #tpu.memory_space<vmem>>, vector<1x32xf32>
    %c0_81 = arith.constant 0 : index
    %c0_82 = arith.constant 0 : index
    %198 = vector.load %arg25[%c0_81, %c0_82] : memref<1x32xf32, #tpu.memory_space<vmem>>, vector<1x32xf32>
    %cst_83 = arith.constant dense<0.000000e+00> : vector<16xf32>
    %199 = vector.multi_reduction <add>, %196, %cst_83 [1] : vector<16x32xf32> to vector<16xf32>
    %200 = vector.shape_cast %199 : vector<16xf32> to vector<16x1xf32>
    %cst_84 = arith.constant 3.200000e+01 : f32
    %201 = vector.broadcast %cst_84 : f32 to vector<16x1xf32>
    %202 = arith.divf %200, %201 : vector<16x1xf32>
    %203 = vector.broadcast %202 : vector<16x1xf32> to vector<16x32xf32>
    %204 = arith.subf %196, %203 : vector<16x32xf32>
    %205 = arith.mulf %204, %204 : vector<16x32xf32>
    %cst_85 = arith.constant dense<0.000000e+00> : vector<16xf32>
    %206 = vector.multi_reduction <add>, %205, %cst_85 [1] : vector<16x32xf32> to vector<16xf32>
    %207 = vector.shape_cast %206 : vector<16xf32> to vector<16x1xf32>
    %cst_86 = arith.constant 3.200000e+01 : f32
    %208 = vector.broadcast %cst_86 : f32 to vector<16x1xf32>
    %209 = arith.divf %207, %208 : vector<16x1xf32>
    %210 = vector.broadcast %202 : vector<16x1xf32> to vector<16x32xf32>
    %211 = arith.subf %196, %210 : vector<16x32xf32>
    %cst_87 = arith.constant 9.99999996E-13 : f32
    %212 = vector.broadcast %cst_87 : f32 to vector<16x1xf32>
    %213 = arith.addf %209, %212 : vector<16x1xf32>
    %214 = math.rsqrt %213 : vector<16x1xf32>
    %215 = vector.broadcast %214 : vector<16x1xf32> to vector<16x32xf32>
    %216 = arith.mulf %211, %215 : vector<16x32xf32>
    %217 = vector.broadcast %197 : vector<1x32xf32> to vector<16x32xf32>
    %218 = arith.mulf %216, %217 : vector<16x32xf32>
    %219 = vector.broadcast %198 : vector<1x32xf32> to vector<16x32xf32>
    %220 = arith.addf %218, %219 : vector<16x32xf32>
    %221 = tpu.iota {dimensions = array<i32: 1>} : vector<2x16xi32>
    %c0_88 = arith.constant 0 : index
    %c0_89 = arith.constant 0 : index
    %222 = vector.load %arg3[%c0_88, %c0_89] : memref<2x1xi32, #tpu.memory_space<vmem>>, vector<2x1xi32>
    %223 = vector.broadcast %222 : vector<2x1xi32> to vector<2x16xi32>
    %224 = arith.cmpi eq, %223, %221 : vector<2x16xi32>
    %225 = arith.extui %224 : vector<2x16xi1> to vector<2x16xi32>
    %226 = arith.sitofp %225 : vector<2x16xi32> to vector<2x16xf32>
    %cst_90 = arith.constant dense<0.000000e+00> : vector<2x32xf32>
    %227 = tpu.matmul %226, %220, %cst_90 {dimension_numbers = #tpu.dot_dimension_numbers<[1], [0], [0], [1], [0, 0, 1, 1], [], []>} : vector<2x16xf32>, vector<16x32xf32>, vector<2x32xf32> -> vector<2x32xf32>
    %c0_91 = arith.constant 0 : index
    %c0_92 = arith.constant 0 : index
    %228 = vector.load %arg26[%c0_91, %c0_92] : memref<32x128xbf16, #tpu.memory_space<vmem>>, vector<32x128xbf16>
    %229 = arith.truncf %227 : vector<2x32xf32> to vector<2x32xbf16>
    %cst_93 = arith.constant dense<0.000000e+00> : vector<2x128xf32>
    %230 = tpu.matmul %229, %228, %cst_93 {dimension_numbers = #tpu.dot_dimension_numbers<[1], [0], [0], [1], [0, 0, 1, 1], [], []>} : vector<2x32xbf16>, vector<32x128xbf16>, vector<2x128xf32> -> vector<2x128xf32>
    %c0_94 = arith.constant 0 : index
    %c0_95 = arith.constant 0 : index
    %231 = vector.load %arg27[%c0_94, %c0_95] : memref<1x128xf32, #tpu.memory_space<vmem>>, vector<1x128xf32>
    %232 = vector.broadcast %231 : vector<1x128xf32> to vector<2x128xf32>
    %233 = arith.addf %230, %232 : vector<2x128xf32>
    %c0_96 = arith.constant 0 : index
    %c0_97 = arith.constant 0 : index
    %234 = vector.load %arg5[%c0_96, %c0_97] : memref<1x128xf32, #tpu.memory_space<vmem>>, vector<1x128xf32>
    %cst_98 = arith.constant 1.000000e+00 : f32
    %235 = vector.broadcast %cst_98 : f32 to vector<1x128xf32>
    %236 = arith.subf %235, %234 : vector<1x128xf32>
    %cst_99 = arith.constant -1.000000e+04 : f32
    %237 = vector.broadcast %cst_99 : f32 to vector<1x128xf32>
    %238 = arith.mulf %236, %237 : vector<1x128xf32>
    %239 = vector.broadcast %238 : vector<1x128xf32> to vector<2x128xf32>
    %240 = arith.addf %233, %239 : vector<2x128xf32>
    %241 = tpu.iota {dimensions = array<i32: 1>} : vector<2x128xi32>
    %c0_100 = arith.constant 0 : index
    %c0_101 = arith.constant 0 : index
    %242 = vector.load %arg4[%c0_100, %c0_101] : memref<2x1xi32, #tpu.memory_space<vmem>>, vector<2x1xi32>
    %243 = vector.broadcast %242 : vector<2x1xi32> to vector<2x128xi32>
    %244 = arith.cmpi eq, %243, %241 : vector<2x128xi32>
    %cst_102 = arith.constant -1.000000e+04 : f32
    %245 = vector.broadcast %cst_102 : f32 to vector<2x128xf32>
    %246 = arith.select %244, %245, %240 : vector<2x128xi1>, vector<2x128xf32>
    %c0_103 = arith.constant 0 : index
    %c0_104 = arith.constant 0 : index
    %247 = vector.load %arg28[%c0_103, %c0_104] : memref<2x128xf32, #tpu.memory_space<vmem>>, vector<2x128xf32>
    tpu.vector_store %arg28[%c0_103, %c0_104], %246 {strides = array<i32>} : memref<2x128xf32, #tpu.memory_space<vmem>>, vector<2x128xf32>,
    return
  }
  func.func @transform_0(%arg0: i32) -> (i32, i32) {
    %c0_i32 = arith.constant 0 : i32
    %c0_i32_0 = arith.constant 0 : i32
    %c0_i32_1 = arith.constant 0 : i32
    return %c0_i32, %c0_i32_0 : i32, i32
  }
  func.func @transform_1(%arg0: i32) -> (i32, i32, i32) {
    %c0_i32 = arith.constant 0 : i32
    %c0_i32_0 = arith.constant 0 : i32
    %c0_i32_1 = arith.constant 0 : i32
    %c0_i32_2 = arith.constant 0 : i32
    return %c0_i32, %c0_i32_0, %c0_i32_1 : i32, i32, i32
  }
  func.func @transform_2(%arg0: i32) -> (i32, i32) {
    %c0_i32 = arith.constant 0 : i32
    %c0_i32_0 = arith.constant 0 : i32
    %c0_i32_1 = arith.constant 0 : i32
    return %c0_i32, %c0_i32_0 : i32, i32
  }
  func.func @transform_3(%arg0: i32) -> (i32, i32) {
    %c0_i32 = arith.constant 0 : i32
    %c0_i32_0 = arith.constant 0 : i32
    %c0_i32_1 = arith.constant 0 : i32
    return %c0_i32, %c0_i32_0 : i32, i32
  }
  func.func @transform_4(%arg0: i32) -> (i32, i32) {
    %c0_i32 = arith.constant 0 : i32
    %c0_i32_0 = arith.constant 0 : i32
    %c0_i32_1 = arith.constant 0 : i32
    return %c0_i32, %c0_i32_0 : i32, i32
  }
  func.func @transform_5(%arg0: i32) -> (i32, i32) {
    %c0_i32 = arith.constant 0 : i32
    %c0_i32_0 = arith.constant 0 : i32
    %c0_i32_1 = arith.constant 0 : i32
    return %c0_i32, %c0_i32_0 : i32, i32
  }
  func.func @transform_6(%arg0: i32) -> (i32, i32) {
    %c0_i32 = arith.constant 0 : i32
    %c0_i32_0 = arith.constant 0 : i32
    %c0_i32_1 = arith.constant 0 : i32
    return %c0_i32, %c0_i32_0 : i32, i32
  }
  func.func @transform_7(%arg0: i32) -> (i32, i32) {
    %c0_i32 = arith.constant 0 : i32
    %c0_i32_0 = arith.constant 0 : i32
    %c0_i32_1 = arith.constant 0 : i32
    return %c0_i32, %c0_i32_0 : i32, i32
  }
  func.func @transform_8(%arg0: i32) -> (i32, i32) {
    %c0_i32 = arith.constant 0 : i32
    %c0_i32_0 = arith.constant 0 : i32
    %c0_i32_1 = arith.constant 0 : i32
    return %c0_i32, %c0_i32_0 : i32, i32
  }
  func.func @transform_9(%arg0: i32) -> (i32, i32) {
    %c0_i32 = arith.constant 0 : i32
    %c0_i32_0 = arith.constant 0 : i32
    %c0_i32_1 = arith.constant 0 : i32
    return %c0_i32, %c0_i32_0 : i32, i32
  }
  func.func @transform_10(%arg0: i32) -> (i32, i32) {
    %c0_i32 = arith.constant 0 : i32
    %c0_i32_0 = arith.constant 0 : i32
    %c0_i32_1 = arith.constant 0 : i32
    return %c0_i32, %c0_i32_0 : i32, i32
  }
  func.func @transform_11(%arg0: i32) -> (i32, i32) {
    %c0_i32 = arith.constant 0 : i32
    %c0_i32_0 = arith.constant 0 : i32
    %c0_i32_1 = arith.constant 0 : i32
    return %c0_i32, %c0_i32_0 : i32, i32
  }
  func.func @transform_12(%arg0: i32) -> (i32, i32) {
    %c0_i32 = arith.constant 0 : i32
    %c0_i32_0 = arith.constant 0 : i32
    %c0_i32_1 = arith.constant 0 : i32
    return %c0_i32, %c0_i32_0 : i32, i32
  }
  func.func @transform_13(%arg0: i32) -> (i32, i32) {
    %c0_i32 = arith.constant 0 : i32
    %c0_i32_0 = arith.constant 0 : i32
    %c0_i32_1 = arith.constant 0 : i32
    return %c0_i32, %c0_i32_0 : i32, i32
  }
  func.func @transform_14(%arg0: i32) -> (i32, i32) {
    %c0_i32 = arith.constant 0 : i32
    %c0_i32_0 = arith.constant 0 : i32
    %c0_i32_1 = arith.constant 0 : i32
    return %c0_i32, %c0_i32_0 : i32, i32
  }
  func.func @transform_15(%arg0: i32) -> (i32, i32) {
    %c0_i32 = arith.constant 0 : i32
    %c0_i32_0 = arith.constant 0 : i32
    %c0_i32_1 = arith.constant 0 : i32
    return %c0_i32, %c0_i32_0 : i32, i32
  }
  func.func @transform_16(%arg0: i32) -> (i32, i32) {
    %c0_i32 = arith.constant 0 : i32
    %c0_i32_0 = arith.constant 0 : i32
    %c0_i32_1 = arith.constant 0 : i32
    return %c0_i32, %c0_i32_0 : i32, i32
  }
  func.func @transform_17(%arg0: i32) -> (i32, i32) {
    %c0_i32 = arith.constant 0 : i32
    %c0_i32_0 = arith.constant 0 : i32
    %c0_i32_1 = arith.constant 0 : i32
    return %c0_i32, %c0_i32_0 : i32, i32
  }
  func.func @transform_18(%arg0: i32) -> (i32, i32) {
    %c0_i32 = arith.constant 0 : i32
    %c0_i32_0 = arith.constant 0 : i32
    %c0_i32_1 = arith.constant 0 : i32
    return %c0_i32, %c0_i32_0 : i32, i32
  }
  func.func @transform_19(%arg0: i32) -> (i32, i32) {
    %c0_i32 = arith.constant 0 : i32
    %c0_i32_0 = arith.constant 0 : i32
    %c0_i32_1 = arith.constant 0 : i32
    return %c0_i32, %c0_i32_0 : i32, i32
  }
  func.func @transform_20(%arg0: i32) -> (i32, i32) {
    %c0_i32 = arith.constant 0 : i32
    %c0_i32_0 = arith.constant 0 : i32
    %c0_i32_1 = arith.constant 0 : i32
    return %c0_i32, %c0_i32_0 : i32, i32
  }
  func.func @transform_21(%arg0: i32) -> (i32, i32) {
    %c0_i32 = arith.constant 0 : i32
    %c0_i32_0 = arith.constant 0 : i32
    %c0_i32_1 = arith.constant 0 : i32
    return %c0_i32, %c0_i32_0 : i32, i32
  }
  func.func @transform_22(%arg0: i32) -> (i32, i32) {
    %c0_i32 = arith.constant 0 : i32
    %c0_i32_0 = arith.constant 0 : i32
    %c0_i32_1 = arith.constant 0 : i32
    return %c0_i32, %c0_i32_0 : i32, i32
  }
  func.func @transform_23(%arg0: i32) -> (i32, i32) {
    %c0_i32 = arith.constant 0 : i32
    %c0_i32_0 = arith.constant 0 : i32
    %c0_i32_1 = arith.constant 0 : i32
    return %c0_i32, %c0_i32_0 : i32, i32
  }
  func.func @transform_24(%arg0: i32) -> (i32, i32) {
    %c0_i32 = arith.constant 0 : i32
    %c0_i32_0 = arith.constant 0 : i32
    %c0_i32_1 = arith.constant 0 : i32
    return %c0_i32, %c0_i32_0 : i32, i32
  }
  func.func @transform_25(%arg0: i32) -> (i32, i32) {
    %c0_i32 = arith.constant 0 : i32
    %c0_i32_0 = arith.constant 0 : i32
    %c0_i32_1 = arith.constant 0 : i32
    return %c0_i32, %c0_i32_0 : i32, i32
  }
  func.func @transform_26(%arg0: i32) -> (i32, i32) {
    %c0_i32 = arith.constant 0 : i32
    %c0_i32_0 = arith.constant 0 : i32
    %c0_i32_1 = arith.constant 0 : i32
    return %c0_i32, %c0_i32_0 : i32, i32
  }
  func.func @transform_27(%arg0: i32) -> (i32, i32) {
    %c0_i32 = arith.constant 0 : i32
    %c0_i32_0 = arith.constant 0 : i32
    %c0_i32_1 = arith.constant 0 : i32
    return %c0_i32, %c0_i32_0 : i32, i32
  }
}

</mosaic_0001>

<llo_original>
// kernel: run.1
$region0: #{run.1}
  #allocation0 [shape = 'u32[]', space=smem, size = 0x4, offset = 0x4, fixed_abs, tag = 'smem constant byte address 0x4 - core index']
  #allocation1 [shape = 'u32[144,128]{1,0:T(1,128)}', space=vmem, size = 0x12000, scoped, tag = 'internal scratch']
  %s0 = inlined_call_operand.vmem [shape: s32[16,1], index: 0, kind: input, shape index: {}]
  %s1 = inlined_call_operand.vmem [shape: f32[2,1,8], index: 1, kind: input, shape index: {}]
  %s2 = inlined_call_operand.vmem [shape: s32[2,1], index: 2, kind: input, shape index: {}]
  %s3 = inlined_call_operand.vmem [shape: s32[2,1], index: 3, kind: input, shape index: {}]
  %s4 = inlined_call_operand.vmem [shape: f32[1,128], index: 4, kind: input, shape index: {}]
  %s5 = inlined_call_operand.vmem [shape: f32[128,32], index: 5, kind: input, shape index: {}]
  %s6 = inlined_call_operand.vmem [shape: f32[16,32], index: 6, kind: input, shape index: {}]
  %s7 = inlined_call_operand.vmem [shape: f32[1,32], index: 7, kind: input, shape index: {}, may-alias: {7,13,19,23}]
  %s8 = inlined_call_operand.vmem [shape: f32[1,32], index: 8, kind: input, shape index: {}, may-alias: {8,12,14,18,20,22,24}]
  %s9 = inlined_call_operand.vmem [shape: bf16[32,96], index: 9, kind: input, shape index: {}]
  %s10 = inlined_call_operand.vmem [shape: f32[1,96], index: 10, kind: input, shape index: {}]
  %s11 = inlined_call_operand.vmem [shape: bf16[32,32], index: 11, kind: input, shape index: {}]
  %s12 = inlined_call_operand.vmem [shape: f32[1,32], index: 12, kind: input, shape index: {}, may-alias: {8,12,14,18,20,22,24}]
  %s13 = inlined_call_operand.vmem [shape: f32[1,32], index: 13, kind: input, shape index: {}, may-alias: {7,13,19,23}]
  %s14 = inlined_call_operand.vmem [shape: f32[1,32], index: 14, kind: input, shape index: {}, may-alias: {8,12,14,18,20,22,24}]
  %s15 = inlined_call_operand.vmem [shape: bf16[32,64], index: 15, kind: input, shape index: {}]
  %s16 = inlined_call_operand.vmem [shape: f32[1,64], index: 16, kind: input, shape index: {}]
  %s17 = inlined_call_operand.vmem [shape: bf16[64,32], index: 17, kind: input, shape index: {}]
  %s18 = inlined_call_operand.vmem [shape: f32[1,32], index: 18, kind: input, shape index: {}, may-alias: {8,12,14,18,20,22,24}]
  %s19 = inlined_call_operand.vmem [shape: f32[1,32], index: 19, kind: input, shape index: {}, may-alias: {7,13,19,23}]
  %s20 = inlined_call_operand.vmem [shape: f32[1,32], index: 20, kind: input, shape index: {}, may-alias: {8,12,14,18,20,22,24}]
  %s21 = inlined_call_operand.vmem [shape: bf16[32,32], index: 21, kind: input, shape index: {}]
  %s22 = inlined_call_operand.vmem [shape: f32[1,32], index: 22, kind: input, shape index: {}, may-alias: {8,12,14,18,20,22,24}]
  %s23 = inlined_call_operand.vmem [shape: f32[1,32], index: 23, kind: input, shape index: {}, may-alias: {7,13,19,23}]
  %s24 = inlined_call_operand.vmem [shape: f32[1,32], index: 24, kind: input, shape index: {}, may-alias: {8,12,14,18,20,22,24}]
  %s25 = inlined_call_operand.vmem [shape: bf16[32,128], index: 25, kind: input, shape index: {}]
  %s26 = inlined_call_operand.vmem [shape: f32[1,128], index: 26, kind: input, shape index: {}]
  %s27 = inlined_call_operand.vmem [shape: f32[2,128], index: 27, kind: output, shape index: {}]
  %s28 = sld [smem:[#allocation0]]
  $region118: #{run.1} parent=0
    _
  %s30 = ssub.s32 1, %s28
  %s31 = scalar_select 0, %s30, %s28
  // Predicated region
  $region2: #{run.1} parent=0 // pred_check
    _
  $region3: #{run.1} parent=0 // pred_check_branch
    %33 = sbr.rel (0) target = $region5
  $region4: #{run.1} parent=0 // pred_region
    _
  $region5: #{run.1} parent=0 // pred_fallthru
    _
  // Predicated region
  $region6: #{run.1} parent=0 // pred_check
    _
  $region7: #{run.1} parent=0 // pred_check_branch
    %35 = sbr.rel (0) target = $region9
  $region8: #{run.1} parent=0 // pred_region
    _
  $region9: #{run.1} parent=0 // pred_fallthru
    _
  // Predicated region
  $region10: #{run.1} parent=0 // pred_check
    _
  $region11: #{run.1} parent=0 // pred_check_branch
    %37 = sbr.rel (0) target = $region13
  $region12: #{run.1} parent=0 // pred_region
    _
  $region13: #{run.1} parent=0 // pred_fallthru
    _
  // Predicated region
  $region14: #{run.1} parent=0 // pred_check
    _
  $region15: #{run.1} parent=0 // pred_check_branch
    %39 = sbr.rel (0) target = $region17
  $region16: #{run.1} parent=0 // pred_region
    _
  $region17: #{run.1} parent=0 // pred_fallthru
    _
  // Predicated region
  $region18: #{run.1} parent=0 // pred_check
    _
  $region19: #{run.1} parent=0 // pred_check_branch
    %41 = sbr.rel (0) target = $region21
  $region20: #{run.1} parent=0 // pred_region
    _
  $region21: #{run.1} parent=0 // pred_fallthru
    _
  // Predicated region
  $region22: #{run.1} parent=0 // pred_check
    _
  $region23: #{run.1} parent=0 // pred_check_branch
    %43 = sbr.rel (0) target = $region25
  $region24: #{run.1} parent=0 // pred_region
    _
  $region25: #{run.1} parent=0 // pred_fallthru
    _
  // Predicated region
  $region26: #{run.1} parent=0 // pred_check
    _
  $region27: #{run.1} parent=0 // pred_check_branch
    %45 = sbr.rel (0) target = $region29
  $region28: #{run.1} parent=0 // pred_region
    _
  $region29: #{run.1} parent=0 // pred_fallthru
    _
  // Predicated region
  $region30: #{run.1} parent=0 // pred_check
    _
  $region31: #{run.1} parent=0 // pred_check_branch
    %47 = sbr.rel (0) target = $region33
  $region32: #{run.1} parent=0 // pred_region
    _
  $region33: #{run.1} parent=0 // pred_fallthru
    _
  // Predicated region
  $region34: #{run.1} parent=0 // pred_check
    _
  $region35: #{run.1} parent=0 // pred_check_branch
    %49 = sbr.rel (0) target = $region37
  $region36: #{run.1} parent=0 // pred_region
    _
  $region37: #{run.1} parent=0 // pred_fallthru
    _
  // Predicated region
  $region38: #{run.1} parent=0 // pred_check
    _
  $region39: #{run.1} parent=0 // pred_check_branch
    %51 = sbr.rel (0) target = $region41
  $region40: #{run.1} parent=0 // pred_region
    _
  $region41: #{run.1} parent=0 // pred_fallthru
    _
  // Predicated region
  $region42: #{run.1} parent=0 // pred_check
    _
  $region43: #{run.1} parent=0 // pred_check_branch
    %53 = sbr.rel (0) target = $region45
  $region44: #{run.1} parent=0 // pred_region
    _
  $region45: #{run.1} parent=0 // pred_fallthru
    _
  // Predicated region
  $region46: #{run.1} parent=0 // pred_check
    _
  $region47: #{run.1} parent=0 // pred_check_branch
    %55 = sbr.rel (0) target = $region49
  $region48: #{run.1} parent=0 // pred_region
    _
  $region49: #{run.1} parent=0 // pred_fallthru
    _
  // Predicated region
  $region50: #{run.1} parent=0 // pred_check
    _
  $region51: #{run.1} parent=0 // pred_check_branch
    %57 = sbr.rel (0) target = $region53
  $region52: #{run.1} parent=0 // pred_region
    _
  $region53: #{run.1} parent=0 // pred_fallthru
    _
  // Predicated region
  $region54: #{run.1} parent=0 // pred_check
    _
  $region55: #{run.1} parent=0 // pred_check_branch
    %59 = sbr.rel (0) target = $region57
  $region56: #{run.1} parent=0 // pred_region
    _
  $region57: #{run.1} parent=0 // pred_fallthru
    _
  // Predicated region
  $region58: #{run.1} parent=0 // pred_check
    _
  $region59: #{run.1} parent=0 // pred_check_branch
    %61 = sbr.rel (0) target = $region61
  $region60: #{run.1} parent=0 // pred_region
    _
  $region61: #{run.1} parent=0 // pred_fallthru
    _
  // Predicated region
  $region62: #{run.1} parent=0 // pred_check
    _
  $region63: #{run.1} parent=0 // pred_check_branch
    %63 = sbr.rel (0) target = $region65
  $region64: #{run.1} parent=0 // pred_region
    _
  $region65: #{run.1} parent=0 // pred_fallthru
    _
  // Predicated region
  $region66: #{run.1} parent=0 // pred_check
    _
  $region67: #{run.1} parent=0 // pred_check_branch
    %65 = sbr.rel (0) target = $region69
  $region68: #{run.1} parent=0 // pred_region
    _
  $region69: #{run.1} parent=0 // pred_fallthru
    _
  // Predicated region
  $region70: #{run.1} parent=0 // pred_check
    _
  $region71: #{run.1} parent=0 // pred_check_branch
    %67 = sbr.rel (0) target = $region73
  $region72: #{run.1} parent=0 // pred_region
    _
  $region73: #{run.1} parent=0 // pred_fallthru
    _
  // Predicated region
  $region74: #{run.1} parent=0 // pred_check
    _
  $region75: #{run.1} parent=0 // pred_check_branch
    %69 = sbr.rel (0) target = $region77
  $region76: #{run.1} parent=0 // pred_region
    _
  $region77: #{run.1} parent=0 // pred_fallthru
    _
  // Predicated region
  $region78: #{run.1} parent=0 // pred_check
    _
  $region79: #{run.1} parent=0 // pred_check_branch
    %71 = sbr.rel (0) target = $region81
  $region80: #{run.1} parent=0 // pred_region
    _
  $region81: #{run.1} parent=0 // pred_fallthru
    _
  // Predicated region
  $region82: #{run.1} parent=0 // pred_check
    _
  $region83: #{run.1} parent=0 // pred_check_branch
    %73 = sbr.rel (0) target = $region85
  $region84: #{run.1} parent=0 // pred_region
    _
  $region85: #{run.1} parent=0 // pred_fallthru
    _
  // Predicated region
  $region86: #{run.1} parent=0 // pred_check
    _
  $region87: #{run.1} parent=0 // pred_check_branch
    %75 = sbr.rel (0) target = $region89
  $region88: #{run.1} parent=0 // pred_region
    _
  $region89: #{run.1} parent=0 // pred_fallthru
    _
  // Predicated region
  $region90: #{run.1} parent=0 // pred_check
    _
  $region91: #{run.1} parent=0 // pred_check_branch
    %77 = sbr.rel (0) target = $region93
  $region92: #{run.1} parent=0 // pred_region
    _
  $region93: #{run.1} parent=0 // pred_fallthru
    _
  // Predicated region
  $region94: #{run.1} parent=0 // pred_check
    _
  $region95: #{run.1} parent=0 // pred_check_branch
    %79 = sbr.rel (0) target = $region97
  $region96: #{run.1} parent=0 // pred_region
    _
  $region97: #{run.1} parent=0 // pred_fallthru
    _
  // Predicated region
  $region98: #{run.1} parent=0 // pred_check
    _
  $region99: #{run.1} parent=0 // pred_check_branch
    %81 = sbr.rel (0) target = $region101
  $region100: #{run.1} parent=0 // pred_region
    _
  $region101: #{run.1} parent=0 // pred_fallthru
    _
  // Predicated region
  $region102: #{run.1} parent=0 // pred_check
    _
  $region103: #{run.1} parent=0 // pred_check_branch
    %83 = sbr.rel (0) target = $region105
  $region104: #{run.1} parent=0 // pred_region
    _
  $region105: #{run.1} parent=0 // pred_fallthru
    _
  // Predicated region
  $region106: #{run.1} parent=0 // pred_check
    _
  $region107: #{run.1} parent=0 // pred_check_branch
    %85 = sbr.rel (0) target = $region109
  $region108: #{run.1} parent=0 // pred_region
    _
  $region109: #{run.1} parent=0 // pred_fallthru
    _
  %v87 = vld [vmem:[%s0] sm:$0xff]
  %v88 = vld [vmem:[%s0 + $0x8] sm:$0xff]
  %v89 = vlaneseq
  %v90 = vand.u32 %v89, 127
  %91 = vset.pattern.permute.xlu0 0
  %92 = vperm.xlu0 %91, %v87
  %v93 = vpop.permute.xlu0 %92
  %94 = vset.pattern.permute.xlu0 0
  %95 = vperm.xlu0 %94, %v88
  %v96 = vpop.permute.xlu0 %95
  %vm97 = vcmp.eq.s32.totalorder %v93, %v90
  %vm98 = vcmp.eq.s32.totalorder %v96, %v90
  %v99 = vsel %vm97, 1, 0
  %v100 = vsel %vm98, 1, 0
  %v101 = vcvt.s32.f32 %v99
  %v102 = vcvt.s32.f32 %v100
  %v103 = vld [vmem:[%s5] sm:$0xff]
  %v104 = vld [vmem:[%s5 + $0x8] sm:$0xff]
  %v105 = vld [vmem:[%s5 + $0x10] sm:$0xff]
  %v106 = vld [vmem:[%s5 + $0x18] sm:$0xff]
  %v107 = vld [vmem:[%s5 + $0x20] sm:$0xff]
  %v108 = vld [vmem:[%s5 + $0x28] sm:$0xff]
  %v109 = vld [vmem:[%s5 + $0x30] sm:$0xff]
  %v110 = vld [vmem:[%s5 + $0x38] sm:$0xff]
  %v111 = vld [vmem:[%s5 + $0x40] sm:$0xff]
  %v112 = vld [vmem:[%s5 + $0x48] sm:$0xff]
  %v113 = vld [vmem:[%s5 + $0x50] sm:$0xff]
  %v114 = vld [vmem:[%s5 + $0x58] sm:$0xff]
  %v115 = vld [vmem:[%s5 + $0x60] sm:$0xff]
  %v116 = vld [vmem:[%s5 + $0x68] sm:$0xff]
  %v117 = vld [vmem:[%s5 + $0x70] sm:$0xff]
  %v118 = vld [vmem:[%s5 + $0x78] sm:$0xff]
  %v119 = vld [vmem:[%s6] sm:$0xff]
  %v120 = vld [vmem:[%s6 + $0x8] sm:$0xff]
  %121 = vmatprep.subr.mxu0 0.0
  %122 = vmatpush1.msra.mxu0 %v118
  %123 = vmatprep.subr.mxu0 0.0
  %124 = vmatpush1.msra.mxu0 %v117
  %125 = vmatprep.subr.mxu0 0.0
  %126 = vmatpush1.msra.mxu0 %v116
  %127 = vmatprep.subr.mxu0 0.0
  %128 = vmatpush1.msra.mxu0 %v115
  %129 = vmatprep.subr.mxu0 0.0
  %130 = vmatpush1.msra.mxu0 %v114
  %131 = vmatprep.subr.mxu0 0.0
  %132 = vmatpush1.msra.mxu0 %v113
  %133 = vmatprep.subr.mxu0 0.0
  %134 = vmatpush1.msra.mxu0 %v112
  %135 = vmatprep.subr.mxu0 0.0
  %136 = vmatpush1.msra.mxu0 %v111
  %137 = vmatprep.subr.mxu0 0.0
  %138 = vmatpush1.msra.mxu0 %v110
  %139 = vmatprep.subr.mxu0 0.0
  %140 = vmatpush1.msra.mxu0 %v109
  %141 = vmatprep.subr.mxu0 0.0
  %142 = vmatpush1.msra.mxu0 %v108
  %143 = vmatprep.subr.mxu0 0.0
  %144 = vmatpush1.msra.mxu0 %v107
  %145 = vmatprep.subr.mxu0 0.0
  %146 = vmatpush1.msra.mxu0 %v106
  %147 = vmatprep.subr.mxu0 0.0
  %148 = vmatpush1.msra.mxu0 %v105
  %149 = vmatprep.subr.mxu0 0.0
  %150 = vmatpush1.msra.mxu0 %v104
  %151 = vmatprep.subr.mxu0 0.0
  %152 = vmatpush1.msra.mxu0 %v103
  %153 = vmatprep.subr.mxu0 0.0
  %154 = vmatpush2.msra.mxu0 0.0
  %155 = vmatprep.subr.mxu0 0.0
  %156 = vmatpush2.msra.mxu0 0.0
  %157 = vmatprep.subr.mxu0 0.0
  %158 = vmatpush2.msra.mxu0 0.0
  %159 = vmatprep.subr.mxu0 0.0
  %160 = vmatpush2.msra.mxu0 0.0
  %161 = vmatprep.subr.mxu0 0.0
  %162 = vmatpush2.msra.mxu0 0.0
  %163 = vmatprep.subr.mxu0 0.0
  %164 = vmatpush2.msra.mxu0 0.0
  %165 = vmatprep.subr.mxu0 0.0
  %166 = vmatpush2.msra.mxu0 0.0
  %167 = vmatprep.subr.mxu0 0.0
  %168 = vmatpush2.msra.mxu0 0.0
  %169 = vmatprep.subr.mxu0 0.0
  %170 = vmatpush2.msra.mxu0 0.0
  %171 = vmatprep.subr.mxu0 0.0
  %172 = vmatpush2.msra.mxu0 0.0
  %173 = vmatprep.subr.mxu0 0.0
  %174 = vmatpush2.msra.mxu0 0.0
  %175 = vmatprep.subr.mxu0 0.0
  %176 = vmatpush2.msra.mxu0 0.0
  %177 = vmatprep.subr.mxu0 0.0
  %178 = vmatpush2.msra.mxu0 0.0
  %179 = vmatprep.subr.mxu0 0.0
  %180 = vmatpush2.msra.mxu0 0.0
  %181 = vmatprep.subr.mxu0 0.0
  %182 = vmatpush2.msra.mxu0 0.0
  %183 = vmatprep.subr.mxu0 0.0
  %184 = vmatpush2.msra.mxu0 0.0
  %185 = vmatprep.mubr.f32.mxu0 0.0
  %186 = vmatmul.mubr.f32.gmra.mxu0 %v101
  %v187 = vpop.f32.mrf.mxu0
  %v188 = vadd.f32 %v119, %v187
  %v189 = vpop.f32.mrf.mxu0
  %190 = vmatprep.mubr.f32.mxu0 0.0
  %191 = vmatmul.mubr.f32.gmra.mxu0 %v102
  %v192 = vpop.f32.mrf.mxu0
  %v193 = vadd.f32 %v120, %v192
  %v194 = vpop.f32.mrf.mxu0
  %195 = vdwg.mxu0
  %v196 = vld [vmem:[%s7] sm:$0x1]
  %v197 = vld [vmem:[%s8] sm:$0x1]
  %vm198 = vcmask 261120
  %v199 = vsel %vm198, %v188, 0.0
  %200 = vadd.xlane.f32.xlu0 %v199
  %v201 = vpop.xlane.xlu0 %200
  %v202 = vsel %vm198, %v193, 0.0
  %203 = vadd.xlane.f32.xlu0 %v202
  %v204 = vpop.xlane.xlu0 %203
  %v205 = vrcp.pop 32.0
  %v206 = vmul.f32 %v201, %v205
  %v207 = vmul.f32 %v204, %v205
  %v208 = vsub.f32 %v188, %v206
  %v209 = vsub.f32 %v193, %v207
  %v210 = vmul.f32 %v208, %v208
  %v211 = vmul.f32 %v209, %v209
  %v212 = vsel %vm198, %v210, 0.0
  %213 = vadd.xlane.f32.xlu0 %v212
  %v214 = vpop.xlane.xlu0 %213
  %v215 = vsel %vm198, %v211, 0.0
  %216 = vadd.xlane.f32.xlu0 %v215
  %v217 = vpop.xlane.xlu0 %216
  %v218 = vmul.f32 %v214, %v205
  %v219 = vmul.f32 %v217, %v205
  %v220 = vadd.f32 %v218, 1e-12
  %v221 = vadd.f32 %v219, 1e-12
  %v222 = vrsqrt.pop %v220
  %v223 = vrsqrt.pop %v221
  %v224 = vmul.f32 %v208, %v222
  %v225 = vmul.f32 %v209, %v223
  %v227 = vlaneseq
  %v228 = vshrl.u32 %v227, 7
  %v229 = vsub.s32 0, %v228
  %v230 = vrot.slane %v196, %v229
  %v232 = vmul.f32 %v224, %v230
  %v233 = vmul.f32 %v225, %v230
  %v235 = vlaneseq
  %v236 = vshrl.u32 %v235, 7
  %v237 = vsub.s32 0, %v236
  %v238 = vrot.slane %v197, %v237
  %v240 = vadd.f32 %v232, %v238
  %v241 = vadd.f32 %v233, %v238
  %v242 = vld [vmem:[%s9] sm:$0xf]
  %v243 = vld [vmem:[%s9 + $0x4] sm:$0xf]
  %v244 = vld [vmem:[%s9 + $0x8] sm:$0xf]
  %v245 = vld [vmem:[%s9 + $0xc] sm:$0xf]
  %v246 = vpack.c.bf16 %v241, %v240
  %v247 = vld [vmem:[%s10] sm:$0x1]
  %v249 = vlaneseq
  %v250 = vshrl.u32 %v249, 7
  %v251 = vsub.s32 0, %v250
  %v252 = vrot.slane %v247, %v251
  %v258 = vunpack.c.l.b16 %v242
  %v259 = vunpack.c.l.b16 %v243
  %v260 = vunpack.c.l.b16 %v244
  %v261 = vunpack.c.l.b16 %v245
  %v262 = vpack.c.b16 %v259, %v258
  %v263 = vpack.c.b16 %v261, %v260
  %v267 = vsel %vm198, %v246, 0
  %269 = vmatprep.subr.bf16.mxu0 0
  %270 = vmatpush1.bf16.msra.mxu0 0
  %271 = vmatprep.subr.bf16.mxu0 0
  %272 = vmatpush1.bf16.msra.mxu0 0
  %273 = vmatprep.subr.bf16.mxu0 0
  %274 = vmatpush1.bf16.msra.mxu0 0
  %275 = vmatprep.subr.bf16.mxu0 0
  %276 = vmatpush1.bf16.msra.mxu0 0
  %277 = vmatprep.subr.bf16.mxu0 0
  %278 = vmatpush1.bf16.msra.mxu0 0
  %279 = vmatprep.subr.bf16.mxu0 0
  %280 = vmatpush1.bf16.msra.mxu0 0
  %281 = vmatprep.subr.bf16.mxu0 0
  %282 = vmatpush1.bf16.msra.mxu0 %v263
  %283 = vmatprep.subr.bf16.mxu0 0
  %284 = vmatpush1.bf16.msra.mxu0 %v262
  %285 = vmatprep.subr.bf16.mxu0 0
  %286 = vmatpush2.bf16.msra.mxu0 0
  %287 = vmatprep.subr.bf16.mxu0 0
  %288 = vmatpush2.bf16.msra.mxu0 0
  %289 = vmatprep.subr.bf16.mxu0 0
  %290 = vmatpush2.bf16.msra.mxu0 0
  %291 = vmatprep.subr.bf16.mxu0 0
  %292 = vmatpush2.bf16.msra.mxu0 0
  %293 = vmatprep.subr.bf16.mxu0 0
  %294 = vmatpush2.bf16.msra.mxu0 0
  %295 = vmatprep.subr.bf16.mxu0 0
  %296 = vmatpush2.bf16.msra.mxu0 0
  %297 = vmatprep.subr.bf16.mxu0 0
  %298 = vmatpush2.bf16.msra.mxu0 0
  %299 = vmatprep.subr.bf16.mxu0 0
  %300 = vmatpush2.bf16.msra.mxu0 0
  %301 = vmatprep.mubr.bf16.mxu0 0
  %302 = vmatmul.mubr.bf16.gmra.mxu0 %v267
  %v303 = vpop.f32.mrf.mxu0
  %v304 = vadd.f32 %v252, %v303
  %v305 = vpop.f32.mrf.mxu0
  %v306 = vpop.f32.mrf.mxu0
  %v307 = vadd.f32 %v252, %v306
  %v308 = vpop.f32.mrf.mxu0
  %309 = vdwg.mxu0
  %v310 = vld [vmem:[%s1] sm:$0x1]
  %v311 = vld [vmem:[%s1 + $0x1] sm:$0x1]
  %v312 = vpack.c.bf16 %v304, %v304
  %v313 = vpack.c.bf16 %v307, %v307
  %v316 = vlaneseq
  %v317 = vshrl.u32 %v316, 7
  %v318 = vsub.s32 0, %v317
  %v319 = vrot.slane %v310, %v318
  %v320 = vlaneseq
  %v321 = vshrl.u32 %v320, 7
  %v322 = vsub.s32 0, %v321
  %v323 = vrot.slane %v311, %v322
  %327 = vrot.lane.b32.xlu0 %v312, 96
  %v328 = vpop.permute.xlu0 %327
  %vm329 = vcmask 130048
  %v331 = vsel %vm329, %v312, 0
  %v334 = vsel %vm329, %v328, 0
  %336 = vmatprep.subr.bf16.mxu0 0
  %337 = vmatpush1.bf16.xpose.msra.mxu0 0
  %338 = vmatprep.subr.bf16.mxu0 0
  %339 = vmatpush1.bf16.xpose.msra.mxu0 0
  %340 = vmatprep.subr.bf16.mxu0 0
  %341 = vmatpush1.bf16.xpose.msra.mxu0 0
  %342 = vmatprep.subr.bf16.mxu0 0
  %343 = vmatpush1.bf16.xpose.msra.mxu0 0
  %344 = vmatprep.subr.bf16.mxu0 0
  %345 = vmatpush1.bf16.xpose.msra.mxu0 0
  %346 = vmatprep.subr.bf16.mxu0 0
  %347 = vmatpush1.bf16.xpose.msra.mxu0 0
  %348 = vmatprep.subr.bf16.mxu0 0
  %349 = vmatpush1.bf16.xpose.msra.mxu0 0
  %350 = vmatprep.subr.bf16.mxu0 0
  %351 = vmatpush1.bf16.xpose.msra.mxu0 %v334
  %352 = vmatprep.subr.bf16.mxu0 0
  %353 = vmatpush2.bf16.xpose.msra.mxu0 0
  %354 = vmatprep.subr.bf16.mxu0 0
  %355 = vmatpush2.bf16.xpose.msra.mxu0 0
  %356 = vmatprep.subr.bf16.mxu0 0
  %357 = vmatpush2.bf16.xpose.msra.mxu0 0
  %358 = vmatprep.subr.bf16.mxu0 0
  %359 = vmatpush2.bf16.xpose.msra.mxu0 0
  %360 = vmatprep.subr.bf16.mxu0 0
  %361 = vmatpush2.bf16.xpose.msra.mxu0 0
  %362 = vmatprep.subr.bf16.mxu0 0
  %363 = vmatpush2.bf16.xpose.msra.mxu0 0
  %364 = vmatprep.subr.bf16.mxu0 0
  %365 = vmatpush2.bf16.xpose.msra.mxu0 0
  %366 = vmatprep.subr.bf16.mxu0 0
  %367 = vmatpush2.bf16.xpose.msra.mxu0 0
  %368 = vmatprep.mubr.bf16.mxu0 0
  %369 = vmatmul.mubr.bf16.gmra.mxu0 %v331
  %v370 = vpop.f32.mrf.mxu0
  %v371 = vadd.f32 %v319, %v370
  %v372 = vpop.f32.mrf.mxu0
  %v373 = vpop.f32.mrf.mxu0
  %v374 = vpop.f32.mrf.mxu0
  %375 = vdwg.mxu0
  %377 = vrot.lane.b32.xlu0 %v313, 96
  %v378 = vpop.permute.xlu0 %377
  %v380 = vsel %vm329, %v313, 0
  %v383 = vsel %vm329, %v378, 0
  %385 = vmatprep.subr.bf16.mxu0 0
  %386 = vmatpush1.bf16.xpose.msra.mxu0 0
  %387 = vmatprep.subr.bf16.mxu0 0
  %388 = vmatpush1.bf16.xpose.msra.mxu0 0
  %389 = vmatprep.subr.bf16.mxu0 0
  %390 = vmatpush1.bf16.xpose.msra.mxu0 0
  %391 = vmatprep.subr.bf16.mxu0 0
  %392 = vmatpush1.bf16.xpose.msra.mxu0 0
  %393 = vmatprep.subr.bf16.mxu0 0
  %394 = vmatpush1.bf16.xpose.msra.mxu0 0
  %395 = vmatprep.subr.bf16.mxu0 0
  %396 = vmatpush1.bf16.xpose.msra.mxu0 0
  %397 = vmatprep.subr.bf16.mxu0 0
  %398 = vmatpush1.bf16.xpose.msra.mxu0 0
  %399 = vmatprep.subr.bf16.mxu0 0
  %400 = vmatpush1.bf16.xpose.msra.mxu0 %v383
  %401 = vmatprep.subr.bf16.mxu0 0
  %402 = vmatpush2.bf16.xpose.msra.mxu0 0
  %403 = vmatprep.subr.bf16.mxu0 0
  %404 = vmatpush2.bf16.xpose.msra.mxu0 0
  %405 = vmatprep.subr.bf16.mxu0 0
  %406 = vmatpush2.bf16.xpose.msra.mxu0 0
  %407 = vmatprep.subr.bf16.mxu0 0
  %408 = vmatpush2.bf16.xpose.msra.mxu0 0
  %409 = vmatprep.subr.bf16.mxu0 0
  %410 = vmatpush2.bf16.xpose.msra.mxu0 0
  %411 = vmatprep.subr.bf16.mxu0 0
  %412 = vmatpush2.bf16.xpose.msra.mxu0 0
  %413 = vmatprep.subr.bf16.mxu0 0
  %414 = vmatpush2.bf16.xpose.msra.mxu0 0
  %415 = vmatprep.subr.bf16.mxu0 0
  %416 = vmatpush2.bf16.xpose.msra.mxu0 0
  %417 = vmatprep.mubr.bf16.mxu0 0
  %418 = vmatmul.mubr.bf16.gmra.mxu0 %v380
  %v419 = vpop.f32.mrf.mxu0
  %v420 = vadd.f32 %v323, %v419
  %v421 = vpop.f32.mrf.mxu0
  %v422 = vpop.f32.mrf.mxu0
  %v423 = vpop.f32.mrf.mxu0
  %424 = vdwg.mxu0
  %vm425 = vcmask 64512
  %v426 = vsel %vm425, %v371, -inf
  %427 = vmax.xlane.f32.xlu0 %v426
  %v428 = vpop.xlane.xlu0 %427
  %v429 = vsel %vm425, %v420, -inf
  %430 = vmax.xlane.f32.xlu0 %v429
  %v431 = vpop.xlane.xlu0 %430
  %v432 = vsub.f32 %v371, %v428
  %v433 = vsub.f32 %v420, %v431
  %v434 = vmul.f32 %v432, 1.442695
  %v435 = vpow.pop %v434
  %v436 = vmul.f32 %v433, 1.442695
  %v437 = vpow.pop %v436
  %v438 = vsel %vm425, %v435, 0.0
  %439 = vadd.xlane.f32.xlu0 %v438
  %v440 = vpop.xlane.xlu0 %439
  %v441 = vsel %vm425, %v437, 0.0
  %442 = vadd.xlane.f32.xlu0 %v441
  %v443 = vpop.xlane.xlu0 %442
  %v444 = vrcp.pop %v440
  %v445 = vrcp.pop %v443
  %v446 = vmul.f32 %v435, %v444
  %v447 = vmul.f32 %v437, %v445
  %v448 = vpack.c.bf16 %v446, %v446
  %v449 = vpack.c.bf16 %v447, %v447
  %450 = vrot.lane.b32.xlu0 %v312, 64
  %v451 = vpop.permute.xlu0 %450
  %v453 = vsel %vm425, %v448, 0
  %vm455 = vcmask 1043456
  %v457 = vsel %vm455, %v451, 0
  %459 = vmatprep.subr.bf16.mxu0 0
  %460 = vmatpush1.bf16.msra.mxu0 0
  %461 = vmatprep.subr.bf16.mxu0 0
  %462 = vmatpush1.bf16.msra.mxu0 0
  %463 = vmatprep.subr.bf16.mxu0 0
  %464 = vmatpush1.bf16.msra.mxu0 0
  %465 = vmatprep.subr.bf16.mxu0 0
  %466 = vmatpush1.bf16.msra.mxu0 0
  %467 = vmatprep.subr.bf16.mxu0 0
  %468 = vmatpush1.bf16.msra.mxu0 0
  %469 = vmatprep.subr.bf16.mxu0 0
  %470 = vmatpush1.bf16.msra.mxu0 0
  %471 = vmatprep.subr.bf16.mxu0 0
  %472 = vmatpush1.bf16.msra.mxu0 0
  %473 = vmatprep.subr.bf16.mxu0 0
  %474 = vmatpush1.bf16.msra.mxu0 %v457
  %475 = vmatprep.subr.bf16.mxu0 0
  %476 = vmatpush2.bf16.msra.mxu0 0
  %477 = vmatprep.subr.bf16.mxu0 0
  %478 = vmatpush2.bf16.msra.mxu0 0
  %479 = vmatprep.subr.bf16.mxu0 0
  %480 = vmatpush2.bf16.msra.mxu0 0
  %481 = vmatprep.subr.bf16.mxu0 0
  %482 = vmatpush2.bf16.msra.mxu0 0
  %483 = vmatprep.subr.bf16.mxu0 0
  %484 = vmatpush2.bf16.msra.mxu0 0
  %485 = vmatprep.subr.bf16.mxu0 0
  %486 = vmatpush2.bf16.msra.mxu0 0
  %487 = vmatprep.subr.bf16.mxu0 0
  %488 = vmatpush2.bf16.msra.mxu0 0
  %489 = vmatprep.subr.bf16.mxu0 0
  %490 = vmatpush2.bf16.msra.mxu0 0
  %491 = vmatprep.mubr.bf16.mxu0 0
  %492 = vmatmul.mubr.bf16.gmra.mxu0 %v453
  %v493 = vpop.f32.mrf.mxu0
  %v494 = vadd.f32 0.0, %v493
  %v495 = vpop.f32.mrf.mxu0
  %v496 = vpop.f32.mrf.mxu0
  %v497 = vpop.f32.mrf.mxu0
  %498 = vdwg.mxu0
  %499 = vrot.lane.b32.xlu0 %v313, 64
  %v500 = vpop.permute.xlu0 %499
  %v502 = vsel %vm425, %v449, 0
  %v505 = vsel %vm455, %v500, 0
  %507 = vmatprep.subr.bf16.mxu0 0
  %508 = vmatpush1.bf16.msra.mxu0 0
  %509 = vmatprep.subr.bf16.mxu0 0
  %510 = vmatpush1.bf16.msra.mxu0 0
  %511 = vmatprep.subr.bf16.mxu0 0
  %512 = vmatpush1.bf16.msra.mxu0 0
  %513 = vmatprep.subr.bf16.mxu0 0
  %514 = vmatpush1.bf16.msra.mxu0 0
  %515 = vmatprep.subr.bf16.mxu0 0
  %516 = vmatpush1.bf16.msra.mxu0 0
  %517 = vmatprep.subr.bf16.mxu0 0
  %518 = vmatpush1.bf16.msra.mxu0 0
  %519 = vmatprep.subr.bf16.mxu0 0
  %520 = vmatpush1.bf16.msra.mxu0 0
  %521 = vmatprep.subr.bf16.mxu0 0
  %522 = vmatpush1.bf16.msra.mxu0 %v505
  %523 = vmatprep.subr.bf16.mxu0 0
  %524 = vmatpush2.bf16.msra.mxu0 0
  %525 = vmatprep.subr.bf16.mxu0 0
  %526 = vmatpush2.bf16.msra.mxu0 0
  %527 = vmatprep.subr.bf16.mxu0 0
  %528 = vmatpush2.bf16.msra.mxu0 0
  %529 = vmatprep.subr.bf16.mxu0 0
  %530 = vmatpush2.bf16.msra.mxu0 0
  %531 = vmatprep.subr.bf16.mxu0 0
  %532 = vmatpush2.bf16.msra.mxu0 0
  %533 = vmatprep.subr.bf16.mxu0 0
  %534 = vmatpush2.bf16.msra.mxu0 0
  %535 = vmatprep.subr.bf16.mxu0 0
  %536 = vmatpush2.bf16.msra.mxu0 0
  %537 = vmatprep.subr.bf16.mxu0 0
  %538 = vmatpush2.bf16.msra.mxu0 0
  %539 = vmatprep.mubr.bf16.mxu0 0
  %540 = vmatmul.mubr.bf16.gmra.mxu0 %v502
  %v541 = vpop.f32.mrf.mxu0
  %v542 = vadd.f32 0.0, %v541
  %v543 = vpop.f32.mrf.mxu0
  %v544 = vpop.f32.mrf.mxu0
  %v545 = vpop.f32.mrf.mxu0
  %546 = vdwg.mxu0
  %v547 = vld [vmem:[%s11] sm:$0xf]
  %v548 = vld [vmem:[%s11 + $0x4] sm:$0xf]
  %v549 = vpack.c.bf16 %v542, %v494
  %550 = vrot.lane.b32.xlu0 %v312, 112
  %v551 = vpop.permute.xlu0 %550
  %552 = vrot.lane.b32.xlu0 %v312, 80
  %v553 = vpop.permute.xlu0 %552
  %v555 = vsel %vm329, %v551, 0
  %v558 = vsel %vm329, %v553, 0
  %560 = vmatprep.subr.bf16.mxu0 0
  %561 = vmatpush1.bf16.xpose.msra.mxu0 0
  %562 = vmatprep.subr.bf16.mxu0 0
  %563 = vmatpush1.bf16.xpose.msra.mxu0 0
  %564 = vmatprep.subr.bf16.mxu0 0
  %565 = vmatpush1.bf16.xpose.msra.mxu0 0
  %566 = vmatprep.subr.bf16.mxu0 0
  %567 = vmatpush1.bf16.xpose.msra.mxu0 0
  %568 = vmatprep.subr.bf16.mxu0 0
  %569 = vmatpush1.bf16.xpose.msra.mxu0 0
  %570 = vmatprep.subr.bf16.mxu0 0
  %571 = vmatpush1.bf16.xpose.msra.mxu0 0
  %572 = vmatprep.subr.bf16.mxu0 0
  %573 = vmatpush1.bf16.xpose.msra.mxu0 0
  %574 = vmatprep.subr.bf16.mxu0 0
  %575 = vmatpush1.bf16.xpose.msra.mxu0 %v558
  %576 = vmatprep.subr.bf16.mxu0 0
  %577 = vmatpush2.bf16.xpose.msra.mxu0 0
  %578 = vmatprep.subr.bf16.mxu0 0
  %579 = vmatpush2.bf16.xpose.msra.mxu0 0
  %580 = vmatprep.subr.bf16.mxu0 0
  %581 = vmatpush2.bf16.xpose.msra.mxu0 0
  %582 = vmatprep.subr.bf16.mxu0 0
  %583 = vmatpush2.bf16.xpose.msra.mxu0 0
  %584 = vmatprep.subr.bf16.mxu0 0
  %585 = vmatpush2.bf16.xpose.msra.mxu0 0
  %586 = vmatprep.subr.bf16.mxu0 0
  %587 = vmatpush2.bf16.xpose.msra.mxu0 0
  %588 = vmatprep.subr.bf16.mxu0 0
  %589 = vmatpush2.bf16.xpose.msra.mxu0 0
  %590 = vmatprep.subr.bf16.mxu0 0
  %591 = vmatpush2.bf16.xpose.msra.mxu0 0
  %592 = vmatprep.mubr.bf16.mxu0 0
  %593 = vmatmul.mubr.bf16.gmra.mxu0 %v555
  %v594 = vpop.f32.mrf.mxu0
  %v595 = vadd.f32 %v319, %v594
  %v596 = vpop.f32.mrf.mxu0
  %v597 = vpop.f32.mrf.mxu0
  %v598 = vpop.f32.mrf.mxu0
  %599 = vdwg.mxu0
  %600 = vrot.lane.b32.xlu0 %v313, 112
  %v601 = vpop.permute.xlu0 %600
  %602 = vrot.lane.b32.xlu0 %v313, 80
  %v603 = vpop.permute.xlu0 %602
  %v605 = vsel %vm329, %v601, 0
  %v608 = vsel %vm329, %v603, 0
  %610 = vmatprep.subr.bf16.mxu0 0
  %611 = vmatpush1.bf16.xpose.msra.mxu0 0
  %612 = vmatprep.subr.bf16.mxu0 0
  %613 = vmatpush1.bf16.xpose.msra.mxu0 0
  %614 = vmatprep.subr.bf16.mxu0 0
  %615 = vmatpush1.bf16.xpose.msra.mxu0 0
  %616 = vmatprep.subr.bf16.mxu0 0
  %617 = vmatpush1.bf16.xpose.msra.mxu0 0
  %618 = vmatprep.subr.bf16.mxu0 0
  %619 = vmatpush1.bf16.xpose.msra.mxu0 0
  %620 = vmatprep.subr.bf16.mxu0 0
  %621 = vmatpush1.bf16.xpose.msra.mxu0 0
  %622 = vmatprep.subr.bf16.mxu0 0
  %623 = vmatpush1.bf16.xpose.msra.mxu0 0
  %624 = vmatprep.subr.bf16.mxu0 0
  %625 = vmatpush1.bf16.xpose.msra.mxu0 %v608
  %626 = vmatprep.subr.bf16.mxu0 0
  %627 = vmatpush2.bf16.xpose.msra.mxu0 0
  %628 = vmatprep.subr.bf16.mxu0 0
  %629 = vmatpush2.bf16.xpose.msra.mxu0 0
  %630 = vmatprep.subr.bf16.mxu0 0
  %631 = vmatpush2.bf16.xpose.msra.mxu0 0
  %632 = vmatprep.subr.bf16.mxu0 0
  %633 = vmatpush2.bf16.xpose.msra.mxu0 0
  %634 = vmatprep.subr.bf16.mxu0 0
  %635 = vmatpush2.bf16.xpose.msra.mxu0 0
  %636 = vmatprep.subr.bf16.mxu0 0
  %637 = vmatpush2.bf16.xpose.msra.mxu0 0
  %638 = vmatprep.subr.bf16.mxu0 0
  %639 = vmatpush2.bf16.xpose.msra.mxu0 0
  %640 = vmatprep.subr.bf16.mxu0 0
  %641 = vmatpush2.bf16.xpose.msra.mxu0 0
  %642 = vmatprep.mubr.bf16.mxu0 0
  %643 = vmatmul.mubr.bf16.gmra.mxu0 %v605
  %v644 = vpop.f32.mrf.mxu0
  %v645 = vadd.f32 %v323, %v644
  %v646 = vpop.f32.mrf.mxu0
  %v647 = vpop.f32.mrf.mxu0
  %v648 = vpop.f32.mrf.mxu0
  %649 = vdwg.mxu0
  %v650 = vsel %vm425, %v595, -inf
  %651 = vmax.xlane.f32.xlu0 %v650
  %v652 = vpop.xlane.xlu0 %651
  %v653 = vsel %vm425, %v645, -inf
  %654 = vmax.xlane.f32.xlu0 %v653
  %v655 = vpop.xlane.xlu0 %654
  %v656 = vsub.f32 %v595, %v652
  %v657 = vsub.f32 %v645, %v655
  %v658 = vmul.f32 %v656, 1.442695
  %v659 = vpow.pop %v658
  %v660 = vmul.f32 %v657, 1.442695
  %v661 = vpow.pop %v660
  %v662 = vsel %vm425, %v659, 0.0
  %663 = vadd.xlane.f32.xlu0 %v662
  %v664 = vpop.xlane.xlu0 %663
  %v665 = vsel %vm425, %v661, 0.0
  %666 = vadd.xlane.f32.xlu0 %v665
  %v667 = vpop.xlane.xlu0 %666
  %v668 = vrcp.pop %v664
  %v669 = vrcp.pop %v667
  %v670 = vmul.f32 %v659, %v668
  %v671 = vmul.f32 %v661, %v669
  %v672 = vpack.c.bf16 %v670, %v670
  %v673 = vpack.c.bf16 %v671, %v671
  %674 = vrot.lane.b32.xlu0 %v312, 48
  %v675 = vpop.permute.xlu0 %674
  %v677 = vsel %vm425, %v672, 0
  %v680 = vsel %vm455, %v675, 0
  %682 = vmatprep.subr.bf16.mxu0 0
  %683 = vmatpush1.bf16.msra.mxu0 0
  %684 = vmatprep.subr.bf16.mxu0 0
  %685 = vmatpush1.bf16.msra.mxu0 0
  %686 = vmatprep.subr.bf16.mxu0 0
  %687 = vmatpush1.bf16.msra.mxu0 0
  %688 = vmatprep.subr.bf16.mxu0 0
  %689 = vmatpush1.bf16.msra.mxu0 0
  %690 = vmatprep.subr.bf16.mxu0 0
  %691 = vmatpush1.bf16.msra.mxu0 0
  %692 = vmatprep.subr.bf16.mxu0 0
  %693 = vmatpush1.bf16.msra.mxu0 0
  %694 = vmatprep.subr.bf16.mxu0 0
  %695 = vmatpush1.bf16.msra.mxu0 0
  %696 = vmatprep.subr.bf16.mxu0 0
  %697 = vmatpush1.bf16.msra.mxu0 %v680
  %698 = vmatprep.subr.bf16.mxu0 0
  %699 = vmatpush2.bf16.msra.mxu0 0
  %700 = vmatprep.subr.bf16.mxu0 0
  %701 = vmatpush2.bf16.msra.mxu0 0
  %702 = vmatprep.subr.bf16.mxu0 0
  %703 = vmatpush2.bf16.msra.mxu0 0
  %704 = vmatprep.subr.bf16.mxu0 0
  %705 = vmatpush2.bf16.msra.mxu0 0
  %706 = vmatprep.subr.bf16.mxu0 0
  %707 = vmatpush2.bf16.msra.mxu0 0
  %708 = vmatprep.subr.bf16.mxu0 0
  %709 = vmatpush2.bf16.msra.mxu0 0
  %710 = vmatprep.subr.bf16.mxu0 0
  %711 = vmatpush2.bf16.msra.mxu0 0
  %712 = vmatprep.subr.bf16.mxu0 0
  %713 = vmatpush2.bf16.msra.mxu0 0
  %714 = vmatprep.mubr.bf16.mxu0 0
  %715 = vmatmul.mubr.bf16.gmra.mxu0 %v677
  %v716 = vpop.f32.mrf.mxu0
  %v717 = vadd.f32 0.0, %v716
  %v718 = vpop.f32.mrf.mxu0
  %v719 = vpop.f32.mrf.mxu0
  %v720 = vpop.f32.mrf.mxu0
  %721 = vdwg.mxu0
  %722 = vrot.lane.b32.xlu0 %v313, 48
  %v723 = vpop.permute.xlu0 %722
  %v725 = vsel %vm425, %v673, 0
  %v728 = vsel %vm455, %v723, 0
  %730 = vmatprep.subr.bf16.mxu0 0
  %731 = vmatpush1.bf16.msra.mxu0 0
  %732 = vmatprep.subr.bf16.mxu0 0
  %733 = vmatpush1.bf16.msra.mxu0 0
  %734 = vmatprep.subr.bf16.mxu0 0
  %735 = vmatpush1.bf16.msra.mxu0 0
  %736 = vmatprep.subr.bf16.mxu0 0
  %737 = vmatpush1.bf16.msra.mxu0 0
  %738 = vmatprep.subr.bf16.mxu0 0
  %739 = vmatpush1.bf16.msra.mxu0 0
  %740 = vmatprep.subr.bf16.mxu0 0
  %741 = vmatpush1.bf16.msra.mxu0 0
  %742 = vmatprep.subr.bf16.mxu0 0
  %743 = vmatpush1.bf16.msra.mxu0 0
  %744 = vmatprep.subr.bf16.mxu0 0
  %745 = vmatpush1.bf16.msra.mxu0 %v728
  %746 = vmatprep.subr.bf16.mxu0 0
  %747 = vmatpush2.bf16.msra.mxu0 0
  %748 = vmatprep.subr.bf16.mxu0 0
  %749 = vmatpush2.bf16.msra.mxu0 0
  %750 = vmatprep.subr.bf16.mxu0 0
  %751 = vmatpush2.bf16.msra.mxu0 0
  %752 = vmatprep.subr.bf16.mxu0 0
  %753 = vmatpush2.bf16.msra.mxu0 0
  %754 = vmatprep.subr.bf16.mxu0 0
  %755 = vmatpush2.bf16.msra.mxu0 0
  %756 = vmatprep.subr.bf16.mxu0 0
  %757 = vmatpush2.bf16.msra.mxu0 0
  %758 = vmatprep.subr.bf16.mxu0 0
  %759 = vmatpush2.bf16.msra.mxu0 0
  %760 = vmatprep.subr.bf16.mxu0 0
  %761 = vmatpush2.bf16.msra.mxu0 0
  %762 = vmatprep.mubr.bf16.mxu0 0
  %763 = vmatmul.mubr.bf16.gmra.mxu0 %v725
  %v764 = vpop.f32.mrf.mxu0
  %v765 = vadd.f32 0.0, %v764
  %v766 = vpop.f32.mrf.mxu0
  %v767 = vpop.f32.mrf.mxu0
  %v768 = vpop.f32.mrf.mxu0
  %769 = vdwg.mxu0
  %v770 = vld [vmem:[%s11 + $0x8] sm:$0xf]
  %v771 = vld [vmem:[%s11 + $0xc] sm:$0xf]
  %v772 = vpack.c.bf16 %v765, %v717
  %v775 = vunpack.c.l.b16 %v770
  %v776 = vunpack.c.l.b16 %v771
  %v777 = vpack.c.b16 %v776, %v775
  %v780 = vsel %vm329, %v772, 0
  %782 = vmatprep.subr.bf16.mxu0 0
  %783 = vmatpush1.bf16.msra.mxu0 0
  %784 = vmatprep.subr.bf16.mxu0 0
  %785 = vmatpush1.bf16.msra.mxu0 0
  %786 = vmatprep.subr.bf16.mxu0 0
  %787 = vmatpush1.bf16.msra.mxu0 0
  %788 = vmatprep.subr.bf16.mxu0 0
  %789 = vmatpush1.bf16.msra.mxu0 0
  %790 = vmatprep.subr.bf16.mxu0 0
  %791 = vmatpush1.bf16.msra.mxu0 0
  %792 = vmatprep.subr.bf16.mxu0 0
  %793 = vmatpush1.bf16.msra.mxu0 0
  %794 = vmatprep.subr.bf16.mxu0 0
  %795 = vmatpush1.bf16.msra.mxu0 0
  %796 = vmatprep.subr.bf16.mxu0 0
  %797 = vmatpush1.bf16.msra.mxu0 %v777
  %798 = vmatprep.subr.bf16.mxu0 0
  %799 = vmatpush2.bf16.msra.mxu0 0
  %800 = vmatprep.subr.bf16.mxu0 0
  %801 = vmatpush2.bf16.msra.mxu0 0
  %802 = vmatprep.subr.bf16.mxu0 0
  %803 = vmatpush2.bf16.msra.mxu0 0
  %804 = vmatprep.subr.bf16.mxu0 0
  %805 = vmatpush2.bf16.msra.mxu0 0
  %806 = vmatprep.subr.bf16.mxu0 0
  %807 = vmatpush2.bf16.msra.mxu0 0
  %808 = vmatprep.subr.bf16.mxu0 0
  %809 = vmatpush2.bf16.msra.mxu0 0
  %810 = vmatprep.subr.bf16.mxu0 0
  %811 = vmatpush2.bf16.msra.mxu0 0
  %812 = vmatprep.subr.bf16.mxu0 0
  %813 = vmatpush2.bf16.msra.mxu0 0
  %814 = vmatprep.mubr.bf16.mxu0 0
  %815 = vmatmul.mubr.bf16.gmra.mxu0 %v780
  %v816 = vpop.f32.mrf.mxu0
  %v817 = vadd.f32 0.0, %v816
  %v818 = vpop.f32.mrf.mxu0
  %v819 = vpop.f32.mrf.mxu0
  %v820 = vadd.f32 0.0, %v819
  %v821 = vpop.f32.mrf.mxu0
  %822 = vdwg.mxu0
  %v825 = vunpack.c.l.b16 %v547
  %v826 = vunpack.c.l.b16 %v548
  %v827 = vpack.c.b16 %v826, %v825
  %v830 = vsel %vm329, %v549, 0
  %832 = vmatprep.subr.bf16.mxu0 0
  %833 = vmatpush1.bf16.msra.mxu0 0
  %834 = vmatprep.subr.bf16.mxu0 0
  %835 = vmatpush1.bf16.msra.mxu0 0
  %836 = vmatprep.subr.bf16.mxu0 0
  %837 = vmatpush1.bf16.msra.mxu0 0
  %838 = vmatprep.subr.bf16.mxu0 0
  %839 = vmatpush1.bf16.msra.mxu0 0
  %840 = vmatprep.subr.bf16.mxu0 0
  %841 = vmatpush1.bf16.msra.mxu0 0
  %842 = vmatprep.subr.bf16.mxu0 0
  %843 = vmatpush1.bf16.msra.mxu0 0
  %844 = vmatprep.subr.bf16.mxu0 0
  %845 = vmatpush1.bf16.msra.mxu0 0
  %846 = vmatprep.subr.bf16.mxu0 0
  %847 = vmatpush1.bf16.msra.mxu0 %v827
  %848 = vmatprep.subr.bf16.mxu0 0
  %849 = vmatpush2.bf16.msra.mxu0 0
  %850 = vmatprep.subr.bf16.mxu0 0
  %851 = vmatpush2.bf16.msra.mxu0 0
  %852 = vmatprep.subr.bf16.mxu0 0
  %853 = vmatpush2.bf16.msra.mxu0 0
  %854 = vmatprep.subr.bf16.mxu0 0
  %855 = vmatpush2.bf16.msra.mxu0 0
  %856 = vmatprep.subr.bf16.mxu0 0
  %857 = vmatpush2.bf16.msra.mxu0 0
  %858 = vmatprep.subr.bf16.mxu0 0
  %859 = vmatpush2.bf16.msra.mxu0 0
  %860 = vmatprep.subr.bf16.mxu0 0
  %861 = vmatpush2.bf16.msra.mxu0 0
  %862 = vmatprep.subr.bf16.mxu0 0
  %863 = vmatpush2.bf16.msra.mxu0 0
  %864 = vmatprep.mubr.bf16.mxu0 0
  %865 = vmatmul.mubr.bf16.gmra.mxu0 %v830
  %v866 = vpop.f32.mrf.mxu0
  %v867 = vadd.f32 %v817, %v866
  %v868 = vpop.f32.mrf.mxu0
  %v869 = vpop.f32.mrf.mxu0
  %v870 = vadd.f32 %v820, %v869
  %v871 = vpop.f32.mrf.mxu0
  %872 = vdwg.mxu0
  %v873 = vld [vmem:[%s12] sm:$0x1]
  %v875 = vlaneseq
  %v876 = vshrl.u32 %v875, 7
  %v877 = vsub.s32 0, %v876
  %v878 = vrot.slane %v873, %v877
  %v880 = vadd.f32 %v867, %v878
  %v881 = vadd.f32 %v870, %v878
  %v882 = vadd.f32 %v880, %v240
  %v883 = vadd.f32 %v881, %v241
  %v884 = vld [vmem:[%s13] sm:$0x1]
  %v885 = vld [vmem:[%s14] sm:$0x1]
  %v886 = vsel %vm198, %v882, 0.0
  %887 = vadd.xlane.f32.xlu0 %v886
  %v888 = vpop.xlane.xlu0 %887
  %v889 = vsel %vm198, %v883, 0.0
  %890 = vadd.xlane.f32.xlu0 %v889
  %v891 = vpop.xlane.xlu0 %890
  %v892 = vmul.f32 %v888, %v205
  %v893 = vmul.f32 %v891, %v205
  %v894 = vsub.f32 %v882, %v892
  %v895 = vsub.f32 %v883, %v893
  %v896 = vmul.f32 %v894, %v894
  %v897 = vmul.f32 %v895, %v895
  %v898 = vsel %vm198, %v896, 0.0
  %899 = vadd.xlane.f32.xlu0 %v898
  %v900 = vpop.xlane.xlu0 %899
  %v901 = vsel %vm198, %v897, 0.0
  %902 = vadd.xlane.f32.xlu0 %v901
  %v903 = vpop.xlane.xlu0 %902
  %v904 = vmul.f32 %v900, %v205
  %v905 = vmul.f32 %v903, %v205
  %v906 = vadd.f32 %v904, 1e-12
  %v907 = vadd.f32 %v905, 1e-12
  %v908 = vrsqrt.pop %v906
  %v909 = vrsqrt.pop %v907
  %v910 = vmul.f32 %v894, %v908
  %v911 = vmul.f32 %v895, %v909
  %v913 = vlaneseq
  %v914 = vshrl.u32 %v913, 7
  %v915 = vsub.s32 0, %v914
  %v916 = vrot.slane %v884, %v915
  %v918 = vmul.f32 %v910, %v916
  %v919 = vmul.f32 %v911, %v916
  %v921 = vlaneseq
  %v922 = vshrl.u32 %v921, 7
  %v923 = vsub.s32 0, %v922
  %v924 = vrot.slane %v885, %v923
  %v926 = vadd.f32 %v918, %v924
  %v927 = vadd.f32 %v919, %v924
  %v928 = vld [vmem:[%s15] sm:$0xf]
  %v929 = vld [vmem:[%s15 + $0x4] sm:$0xf]
  %v930 = vld [vmem:[%s15 + $0x8] sm:$0xf]
  %v931 = vld [vmem:[%s15 + $0xc] sm:$0xf]
  %v932 = vpack.c.bf16 %v927, %v926
  %v933 = vld [vmem:[%s16] sm:$0x1]
  %v935 = vlaneseq
  %v936 = vshrl.u32 %v935, 7
  %v937 = vsub.s32 0, %v936
  %v938 = vrot.slane %v933, %v937
  %v944 = vunpack.c.l.b16 %v928
  %v945 = vunpack.c.l.b16 %v929
  %v946 = vunpack.c.l.b16 %v930
  %v947 = vunpack.c.l.b16 %v931
  %v948 = vpack.c.b16 %v945, %v944
  %v949 = vpack.c.b16 %v947, %v946
  %v953 = vsel %vm198, %v932, 0
  %955 = vmatprep.subr.bf16.mxu0 0
  %956 = vmatpush1.bf16.msra.mxu0 0
  %957 = vmatprep.subr.bf16.mxu0 0
  %958 = vmatpush1.bf16.msra.mxu0 0
  %959 = vmatprep.subr.bf16.mxu0 0
  %960 = vmatpush1.bf16.msra.mxu0 0
  %961 = vmatprep.subr.bf16.mxu0 0
  %962 = vmatpush1.bf16.msra.mxu0 0
  %963 = vmatprep.subr.bf16.mxu0 0
  %964 = vmatpush1.bf16.msra.mxu0 0
  %965 = vmatprep.subr.bf16.mxu0 0
  %966 = vmatpush1.bf16.msra.mxu0 0
  %967 = vmatprep.subr.bf16.mxu0 0
  %968 = vmatpush1.bf16.msra.mxu0 %v949
  %969 = vmatprep.subr.bf16.mxu0 0
  %970 = vmatpush1.bf16.msra.mxu0 %v948
  %971 = vmatprep.subr.bf16.mxu0 0
  %972 = vmatpush2.bf16.msra.mxu0 0
  %973 = vmatprep.subr.bf16.mxu0 0
  %974 = vmatpush2.bf16.msra.mxu0 0
  %975 = vmatprep.subr.bf16.mxu0 0
  %976 = vmatpush2.bf16.msra.mxu0 0
  %977 = vmatprep.subr.bf16.mxu0 0
  %978 = vmatpush2.bf16.msra.mxu0 0
  %979 = vmatprep.subr.bf16.mxu0 0
  %980 = vmatpush2.bf16.msra.mxu0 0
  %981 = vmatprep.subr.bf16.mxu0 0
  %982 = vmatpush2.bf16.msra.mxu0 0
  %983 = vmatprep.subr.bf16.mxu0 0
  %984 = vmatpush2.bf16.msra.mxu0 0
  %985 = vmatprep.subr.bf16.mxu0 0
  %986 = vmatpush2.bf16.msra.mxu0 0
  %987 = vmatprep.mubr.bf16.mxu0 0
  %988 = vmatmul.mubr.bf16.gmra.mxu0 %v953
  %v989 = vpop.f32.mrf.mxu0
  %v990 = vadd.f32 %v938, %v989
  %v991 = vpop.f32.mrf.mxu0
  %v992 = vpop.f32.mrf.mxu0
  %v993 = vadd.f32 %v938, %v992
  %v994 = vpop.f32.mrf.mxu0
  %995 = vdwg.mxu0
  %v996 = vmul.f32 %v990, 0.5
  %v997 = vmul.f32 %v993, 0.5
  %v998 = vmul.f32 %v990, 0.044715
  %v999 = vmul.f32 %v993, 0.044715
  %v1000 = vmul.f32 %v998, %v990
  %v1001 = vmul.f32 %v999, %v993
  %v1002 = vmul.f32 %v1000, %v990
  %v1003 = vmul.f32 %v1001, %v993
  %v1004 = vadd.f32 %v990, %v1002
  %v1005 = vadd.f32 %v993, %v1003
  %v1006 = vmul.f32 %v1004, 0.7978846
  %v1007 = vmul.f32 %v1005, 0.7978846
  %v1008 = vtanh.pop %v1006
  %v1009 = vtanh.pop %v1007
  %v1010 = vadd.f32 %v1008, 1.0
  %v1011 = vadd.f32 %v1009, 1.0
  %v1012 = vmul.f32 %v996, %v1010
  %v1013 = vmul.f32 %v997, %v1011
  %v1014 = vld [vmem:[%s17] sm:$0xf]
  %v1015 = vld [vmem:[%s17 + $0x4] sm:$0xf]
  %v1016 = vld [vmem:[%s17 + $0x8] sm:$0xf]
  %v1017 = vld [vmem:[%s17 + $0xc] sm:$0xf]
  %v1018 = vld [vmem:[%s17 + $0x10] sm:$0xf]
  %v1019 = vld [vmem:[%s17 + $0x14] sm:$0xf]
  %v1020 = vld [vmem:[%s17 + $0x18] sm:$0xf]
  %v1021 = vld [vmem:[%s17 + $0x1c] sm:$0xf]
  %v1022 = vpack.c.bf16 %v1013, %v1012
  %v1023 = vld [vmem:[%s18] sm:$0x1]
  %v1025 = vlaneseq
  %v1026 = vshrl.u32 %v1025, 7
  %v1027 = vsub.s32 0, %v1026
  %v1028 = vrot.slane %v1023, %v1027
  %v1038 = vunpack.c.l.b16 %v1014
  %v1039 = vunpack.c.l.b16 %v1015
  %v1040 = vunpack.c.l.b16 %v1016
  %v1041 = vunpack.c.l.b16 %v1017
  %v1042 = vunpack.c.l.b16 %v1018
  %v1043 = vunpack.c.l.b16 %v1019
  %v1044 = vunpack.c.l.b16 %v1020
  %v1045 = vunpack.c.l.b16 %v1021
  %v1046 = vpack.c.b16 %v1039, %v1038
  %v1047 = vpack.c.b16 %v1041, %v1040
  %v1048 = vpack.c.b16 %v1043, %v1042
  %v1049 = vpack.c.b16 %v1045, %v1044
  %vm1054 = vcmask 523264
  %v1056 = vsel %vm1054, %v1022, 0
  %1058 = vmatprep.subr.bf16.mxu0 0
  %1059 = vmatpush1.bf16.msra.mxu0 0
  %1060 = vmatprep.subr.bf16.mxu0 0
  %1061 = vmatpush1.bf16.msra.mxu0 0
  %1062 = vmatprep.subr.bf16.mxu0 0
  %1063 = vmatpush1.bf16.msra.mxu0 0
  %1064 = vmatprep.subr.bf16.mxu0 0
  %1065 = vmatpush1.bf16.msra.mxu0 0
  %1066 = vmatprep.subr.bf16.mxu0 0
  %1067 = vmatpush1.bf16.msra.mxu0 %v1049
  %1068 = vmatprep.subr.bf16.mxu0 0
  %1069 = vmatpush1.bf16.msra.mxu0 %v1048
  %1070 = vmatprep.subr.bf16.mxu0 0
  %1071 = vmatpush1.bf16.msra.mxu0 %v1047
  %1072 = vmatprep.subr.bf16.mxu0 0
  %1073 = vmatpush1.bf16.msra.mxu0 %v1046
  %1074 = vmatprep.subr.bf16.mxu0 0
  %1075 = vmatpush2.bf16.msra.mxu0 0
  %1076 = vmatprep.subr.bf16.mxu0 0
  %1077 = vmatpush2.bf16.msra.mxu0 0
  %1078 = vmatprep.subr.bf16.mxu0 0
  %1079 = vmatpush2.bf16.msra.mxu0 0
  %1080 = vmatprep.subr.bf16.mxu0 0
  %1081 = vmatpush2.bf16.msra.mxu0 0
  %1082 = vmatprep.subr.bf16.mxu0 0
  %1083 = vmatpush2.bf16.msra.mxu0 0
  %1084 = vmatprep.subr.bf16.mxu0 0
  %1085 = vmatpush2.bf16.msra.mxu0 0
  %1086 = vmatprep.subr.bf16.mxu0 0
  %1087 = vmatpush2.bf16.msra.mxu0 0
  %1088 = vmatprep.subr.bf16.mxu0 0
  %1089 = vmatpush2.bf16.msra.mxu0 0
  %1090 = vmatprep.mubr.bf16.mxu0 0
  %1091 = vmatmul.mubr.bf16.gmra.mxu0 %v1056
  %v1092 = vpop.f32.mrf.mxu0
  %v1093 = vadd.f32 %v1028, %v1092
  %v1094 = vpop.f32.mrf.mxu0
  %v1095 = vpop.f32.mrf.mxu0
  %v1096 = vadd.f32 %v1028, %v1095
  %v1097 = vpop.f32.mrf.mxu0
  %1098 = vdwg.mxu0
  %v1099 = vadd.f32 %v1093, %v926
  %v1100 = vadd.f32 %v1096, %v927
  %v1101 = vld [vmem:[%s19] sm:$0x1]
  %v1102 = vld [vmem:[%s20] sm:$0x1]
  %v1103 = vsel %vm198, %v1099, 0.0
  %1104 = vadd.xlane.f32.xlu0 %v1103
  %v1105 = vpop.xlane.xlu0 %1104
  %v1106 = vsel %vm198, %v1100, 0.0
  %1107 = vadd.xlane.f32.xlu0 %v1106
  %v1108 = vpop.xlane.xlu0 %1107
  %v1109 = vmul.f32 %v1105, %v205
  %v1110 = vmul.f32 %v1108, %v205
  %v1111 = vsub.f32 %v1099, %v1109
  %v1112 = vsub.f32 %v1100, %v1110
  %v1113 = vmul.f32 %v1111, %v1111
  %v1114 = vmul.f32 %v1112, %v1112
  %v1115 = vsel %vm198, %v1113, 0.0
  %1116 = vadd.xlane.f32.xlu0 %v1115
  %v1117 = vpop.xlane.xlu0 %1116
  %v1118 = vsel %vm198, %v1114, 0.0
  %1119 = vadd.xlane.f32.xlu0 %v1118
  %v1120 = vpop.xlane.xlu0 %1119
  %v1121 = vmul.f32 %v1117, %v205
  %v1122 = vmul.f32 %v1120, %v205
  %v1123 = vadd.f32 %v1121, 1e-12
  %v1124 = vadd.f32 %v1122, 1e-12
  %v1125 = vrsqrt.pop %v1123
  %v1126 = vrsqrt.pop %v1124
  %v1127 = vmul.f32 %v1111, %v1125
  %v1128 = vmul.f32 %v1112, %v1126
  %v1130 = vlaneseq
  %v1131 = vshrl.u32 %v1130, 7
  %v1132 = vsub.s32 0, %v1131
  %v1133 = vrot.slane %v1101, %v1132
  %v1135 = vmul.f32 %v1127, %v1133
  %v1136 = vmul.f32 %v1128, %v1133
  %v1138 = vlaneseq
  %v1139 = vshrl.u32 %v1138, 7
  %v1140 = vsub.s32 0, %v1139
  %v1141 = vrot.slane %v1102, %v1140
  %v1143 = vadd.f32 %v1135, %v1141
  %v1144 = vadd.f32 %v1136, %v1141
  %v1145 = vld [vmem:[%s21] sm:$0xf]
  %v1146 = vld [vmem:[%s21 + $0x4] sm:$0xf]
  %v1147 = vld [vmem:[%s21 + $0x8] sm:$0xf]
  %v1148 = vld [vmem:[%s21 + $0xc] sm:$0xf]
  %v1149 = vpack.c.bf16 %v1144, %v1143
  %v1150 = vld [vmem:[%s22] sm:$0x1]
  %v1152 = vlaneseq
  %v1153 = vshrl.u32 %v1152, 7
  %v1154 = vsub.s32 0, %v1153
  %v1155 = vrot.slane %v1150, %v1154
  %v1161 = vunpack.c.l.b16 %v1145
  %v1162 = vunpack.c.l.b16 %v1146
  %v1163 = vunpack.c.l.b16 %v1147
  %v1164 = vunpack.c.l.b16 %v1148
  %v1165 = vpack.c.b16 %v1162, %v1161
  %v1166 = vpack.c.b16 %v1164, %v1163
  %v1170 = vsel %vm198, %v1149, 0
  %1172 = vmatprep.subr.bf16.mxu0 0
  %1173 = vmatpush1.bf16.msra.mxu0 0
  %1174 = vmatprep.subr.bf16.mxu0 0
  %1175 = vmatpush1.bf16.msra.mxu0 0
  %1176 = vmatprep.subr.bf16.mxu0 0
  %1177 = vmatpush1.bf16.msra.mxu0 0
  %1178 = vmatprep.subr.bf16.mxu0 0
  %1179 = vmatpush1.bf16.msra.mxu0 0
  %1180 = vmatprep.subr.bf16.mxu0 0
  %1181 = vmatpush1.bf16.msra.mxu0 0
  %1182 = vmatprep.subr.bf16.mxu0 0
  %1183 = vmatpush1.bf16.msra.mxu0 0
  %1184 = vmatprep.subr.bf16.mxu0 0
  %1185 = vmatpush1.bf16.msra.mxu0 %v1166
  %1186 = vmatprep.subr.bf16.mxu0 0
  %1187 = vmatpush1.bf16.msra.mxu0 %v1165
  %1188 = vmatprep.subr.bf16.mxu0 0
  %1189 = vmatpush2.bf16.msra.mxu0 0
  %1190 = vmatprep.subr.bf16.mxu0 0
  %1191 = vmatpush2.bf16.msra.mxu0 0
  %1192 = vmatprep.subr.bf16.mxu0 0
  %1193 = vmatpush2.bf16.msra.mxu0 0
  %1194 = vmatprep.subr.bf16.mxu0 0
  %1195 = vmatpush2.bf16.msra.mxu0 0
  %1196 = vmatprep.subr.bf16.mxu0 0
  %1197 = vmatpush2.bf16.msra.mxu0 0
  %1198 = vmatprep.subr.bf16.mxu0 0
  %1199 = vmatpush2.bf16.msra.mxu0 0
  %1200 = vmatprep.subr.bf16.mxu0 0
  %1201 = vmatpush2.bf16.msra.mxu0 0
  %1202 = vmatprep.subr.bf16.mxu0 0
  %1203 = vmatpush2.bf16.msra.mxu0 0
  %1204 = vmatprep.mubr.bf16.mxu0 0
  %1205 = vmatmul.mubr.bf16.gmra.mxu0 %v1170
  %v1206 = vpop.f32.mrf.mxu0
  %v1207 = vadd.f32 %v1155, %v1206
  %v1208 = vpop.f32.mrf.mxu0
  %v1209 = vpop.f32.mrf.mxu0
  %v1210 = vadd.f32 %v1155, %v1209
  %v1211 = vpop.f32.mrf.mxu0
  %1212 = vdwg.mxu0
  %v1213 = vmul.f32 %v1207, 0.5
  %v1214 = vmul.f32 %v1210, 0.5
  %v1215 = vmul.f32 %v1207, 0.044715
  %v1216 = vmul.f32 %v1210, 0.044715
  %v1217 = vmul.f32 %v1215, %v1207
  %v1218 = vmul.f32 %v1216, %v1210
  %v1219 = vmul.f32 %v1217, %v1207
  %v1220 = vmul.f32 %v1218, %v1210
  %v1221 = vadd.f32 %v1207, %v1219
  %v1222 = vadd.f32 %v1210, %v1220
  %v1223 = vmul.f32 %v1221, 0.7978846
  %v1224 = vmul.f32 %v1222, 0.7978846
  %v1225 = vtanh.pop %v1223
  %v1226 = vtanh.pop %v1224
  %v1227 = vadd.f32 %v1225, 1.0
  %v1228 = vadd.f32 %v1226, 1.0
  %v1229 = vmul.f32 %v1213, %v1227
  %v1230 = vmul.f32 %v1214, %v1228
  %v1231 = vld [vmem:[%s23] sm:$0x1]
  %v1232 = vld [vmem:[%s24] sm:$0x1]
  %v1233 = vsel %vm198, %v1229, 0.0
  %1234 = vadd.xlane.f32.xlu0 %v1233
  %v1235 = vpop.xlane.xlu0 %1234
  %v1236 = vsel %vm198, %v1230, 0.0
  %1237 = vadd.xlane.f32.xlu0 %v1236
  %v1238 = vpop.xlane.xlu0 %1237
  %v1239 = vmul.f32 %v1235, %v205
  %v1240 = vmul.f32 %v1238, %v205
  %v1241 = vsub.f32 %v1229, %v1239
  %v1242 = vsub.f32 %v1230, %v1240
  %v1243 = vmul.f32 %v1241, %v1241
  %v1244 = vmul.f32 %v1242, %v1242
  %v1245 = vsel %vm198, %v1243, 0.0
  %1246 = vadd.xlane.f32.xlu0 %v1245
  %v1247 = vpop.xlane.xlu0 %1246
  %v1248 = vsel %vm198, %v1244, 0.0
  %1249 = vadd.xlane.f32.xlu0 %v1248
  %v1250 = vpop.xlane.xlu0 %1249
  %v1251 = vmul.f32 %v1247, %v205
  %v1252 = vmul.f32 %v1250, %v205
  %v1253 = vadd.f32 %v1251, 1e-12
  %v1254 = vadd.f32 %v1252, 1e-12
  %v1255 = vrsqrt.pop %v1253
  %v1256 = vrsqrt.pop %v1254
  %v1257 = vmul.f32 %v1241, %v1255
  %v1258 = vmul.f32 %v1242, %v1256
  %v1260 = vlaneseq
  %v1261 = vshrl.u32 %v1260, 7
  %v1262 = vsub.s32 0, %v1261
  %v1263 = vrot.slane %v1231, %v1262
  %v1265 = vmul.f32 %v1257, %v1263
  %v1266 = vmul.f32 %v1258, %v1263
  %v1268 = vlaneseq
  %v1269 = vshrl.u32 %v1268, 7
  %v1270 = vsub.s32 0, %v1269
  %v1271 = vrot.slane %v1232, %v1270
  %v1273 = vadd.f32 %v1265, %v1271
  %v1274 = vadd.f32 %v1266, %v1271
  %v1275 = vld [vmem:[%s2] sm:$0x3]
  %1276 = vset.pattern.permute.xlu0 0
  %1277 = vperm.xlu0 %1276, %v1275
  %v1278 = vpop.permute.xlu0 %1277
  %vm1279 = vcmp.eq.s32.totalorder %v1278, %v90
  %v1280 = vsel %vm1279, 1, 0
  %v1281 = vcvt.s32.f32 %v1280
  %v1283 = vsel %vm329, %v1281, 0
  %1285 = vmatprep.subr.mxu0 0.0
  %1286 = vmatpush1.msra.mxu0 0.0
  %1287 = vmatprep.subr.mxu0 0.0
  %1288 = vmatpush1.msra.mxu0 0.0
  %1289 = vmatprep.subr.mxu0 0.0
  %1290 = vmatpush1.msra.mxu0 0.0
  %1291 = vmatprep.subr.mxu0 0.0
  %1292 = vmatpush1.msra.mxu0 0.0
  %1293 = vmatprep.subr.mxu0 0.0
  %1294 = vmatpush1.msra.mxu0 0.0
  %1295 = vmatprep.subr.mxu0 0.0
  %1296 = vmatpush1.msra.mxu0 0.0
  %1297 = vmatprep.subr.mxu0 0.0
  %1298 = vmatpush1.msra.mxu0 0.0
  %1299 = vmatprep.subr.mxu0 0.0
  %1300 = vmatpush1.msra.mxu0 0.0
  %1301 = vmatprep.subr.mxu0 0.0
  %1302 = vmatpush1.msra.mxu0 0.0
  %1303 = vmatprep.subr.mxu0 0.0
  %1304 = vmatpush1.msra.mxu0 0.0
  %1305 = vmatprep.subr.mxu0 0.0
  %1306 = vmatpush1.msra.mxu0 0.0
  %1307 = vmatprep.subr.mxu0 0.0
  %1308 = vmatpush1.msra.mxu0 0.0
  %1309 = vmatprep.subr.mxu0 0.0
  %1310 = vmatpush1.msra.mxu0 0.0
  %1311 = vmatprep.subr.mxu0 0.0
  %1312 = vmatpush1.msra.mxu0 0.0
  %1313 = vmatprep.subr.mxu0 0.0
  %1314 = vmatpush1.msra.mxu0 %v1274
  %1315 = vmatprep.subr.mxu0 0.0
  %1316 = vmatpush1.msra.mxu0 %v1273
  %1317 = vmatprep.subr.mxu0 0.0
  %1318 = vmatpush2.msra.mxu0 0.0
  %1319 = vmatprep.subr.mxu0 0.0
  %1320 = vmatpush2.msra.mxu0 0.0
  %1321 = vmatprep.subr.mxu0 0.0
  %1322 = vmatpush2.msra.mxu0 0.0
  %1323 = vmatprep.subr.mxu0 0.0
  %1324 = vmatpush2.msra.mxu0 0.0
  %1325 = vmatprep.subr.mxu0 0.0
  %1326 = vmatpush2.msra.mxu0 0.0
  %1327 = vmatprep.subr.mxu0 0.0
  %1328 = vmatpush2.msra.mxu0 0.0
  %1329 = vmatprep.subr.mxu0 0.0
  %1330 = vmatpush2.msra.mxu0 0.0
  %1331 = vmatprep.subr.mxu0 0.0
  %1332 = vmatpush2.msra.mxu0 0.0
  %1333 = vmatprep.subr.mxu0 0.0
  %1334 = vmatpush2.msra.mxu0 0.0
  %1335 = vmatprep.subr.mxu0 0.0
  %1336 = vmatpush2.msra.mxu0 0.0
  %1337 = vmatprep.subr.mxu0 0.0
  %1338 = vmatpush2.msra.mxu0 0.0
  %1339 = vmatprep.subr.mxu0 0.0
  %1340 = vmatpush2.msra.mxu0 0.0
  %1341 = vmatprep.subr.mxu0 0.0
  %1342 = vmatpush2.msra.mxu0 0.0
  %1343 = vmatprep.subr.mxu0 0.0
  %1344 = vmatpush2.msra.mxu0 0.0
  %1345 = vmatprep.subr.mxu0 0.0
  %1346 = vmatpush2.msra.mxu0 0.0
  %1347 = vmatprep.subr.mxu0 0.0
  %1348 = vmatpush2.msra.mxu0 0.0
  %1349 = vmatprep.mubr.f32.mxu0 0.0
  %1350 = vmatmul.mubr.f32.gmra.mxu0 %v1283
  %v1351 = vpop.f32.mrf.mxu0
  %v1352 = vadd.f32 0.0, %v1351
  %v1353 = vpop.f32.mrf.mxu0
  %1354 = vdwg.mxu0
  %v1355 = vld [vmem:[%s25] sm:$0xf]
  %v1356 = vld [vmem:[%s25 + $0x4] sm:$0xf]
  %v1357 = vld [vmem:[%s25 + $0x8] sm:$0xf]
  %v1358 = vld [vmem:[%s25 + $0xc] sm:$0xf]
  %v1359 = vpack.c.bf16 %v1352, %v1352
  %v1360 = vld [vmem:[%s26] sm:$0x1]
  %v1362 = vlaneseq
  %v1363 = vshrl.u32 %v1362, 7
  %v1364 = vsub.s32 0, %v1363
  %v1365 = vrot.slane %v1360, %v1364
  %v1371 = vunpack.c.l.b16 %v1355
  %v1372 = vunpack.c.l.b16 %v1356
  %v1373 = vunpack.c.l.b16 %v1357
  %v1374 = vunpack.c.l.b16 %v1358
  %v1375 = vpack.c.b16 %v1372, %v1371
  %v1376 = vpack.c.b16 %v1374, %v1373
  %v1380 = vsel %vm198, %v1359, 0
  %1382 = vmatprep.subr.bf16.mxu0 0
  %1383 = vmatpush1.bf16.msra.mxu0 0
  %1384 = vmatprep.subr.bf16.mxu0 0
  %1385 = vmatpush1.bf16.msra.mxu0 0
  %1386 = vmatprep.subr.bf16.mxu0 0
  %1387 = vmatpush1.bf16.msra.mxu0 0
  %1388 = vmatprep.subr.bf16.mxu0 0
  %1389 = vmatpush1.bf16.msra.mxu0 0
  %1390 = vmatprep.subr.bf16.mxu0 0
  %1391 = vmatpush1.bf16.msra.mxu0 0
  %1392 = vmatprep.subr.bf16.mxu0 0
  %1393 = vmatpush1.bf16.msra.mxu0 0
  %1394 = vmatprep.subr.bf16.mxu0 0
  %1395 = vmatpush1.bf16.msra.mxu0 %v1376
  %1396 = vmatprep.subr.bf16.mxu0 0
  %1397 = vmatpush1.bf16.msra.mxu0 %v1375
  %1398 = vmatprep.subr.bf16.mxu0 0
  %1399 = vmatpush2.bf16.msra.mxu0 0
  %1400 = vmatprep.subr.bf16.mxu0 0
  %1401 = vmatpush2.bf16.msra.mxu0 0
  %1402 = vmatprep.subr.bf16.mxu0 0
  %1403 = vmatpush2.bf16.msra.mxu0 0
  %1404 = vmatprep.subr.bf16.mxu0 0
  %1405 = vmatpush2.bf16.msra.mxu0 0
  %1406 = vmatprep.subr.bf16.mxu0 0
  %1407 = vmatpush2.bf16.msra.mxu0 0
  %1408 = vmatprep.subr.bf16.mxu0 0
  %1409 = vmatpush2.bf16.msra.mxu0 0
  %1410 = vmatprep.subr.bf16.mxu0 0
  %1411 = vmatpush2.bf16.msra.mxu0 0
  %1412 = vmatprep.subr.bf16.mxu0 0
  %1413 = vmatpush2.bf16.msra.mxu0 0
  %1414 = vmatprep.mubr.bf16.mxu0 0
  %1415 = vmatmul.mubr.bf16.gmra.mxu0 %v1380
  %v1416 = vpop.f32.mrf.mxu0
  %v1417 = vadd.f32 %v1365, %v1416
  %v1418 = vpop.f32.mrf.mxu0
  %v1419 = vpop.f32.mrf.mxu0
  %v1420 = vpop.f32.mrf.mxu0
  %1421 = vdwg.mxu0
  %v1422 = vld [vmem:[%s4] sm:$0x1]
  %v1423 = vsub.f32 1.0, %v1422
  %v1424 = vmul.f32 %v1423, -10000.0
  %v1426 = vlaneseq
  %v1427 = vshrl.u32 %v1426, 7
  %v1428 = vsub.s32 0, %v1427
  %v1429 = vrot.slane %v1424, %v1428
  %v1431 = vadd.f32 %v1417, %v1429
  %v1432 = vld [vmem:[%s3] sm:$0x3]
  %1433 = vset.pattern.permute.xlu0 0
  %1434 = vperm.xlu0 %1433, %v1432
  %v1435 = vpop.permute.xlu0 %1434
  %vm1436 = vcmp.eq.s32.totalorder %v1435, %v90
  %v1437 = vsel %vm1436, -10000.0, %v1431
  %1438 = vst [vmem:[%s27] sm:$0x3] %v1437
  // Predicated region
  $region110: #{run.1} parent=0 // pred_check
    _
  $region111: #{run.1} parent=0 // pred_check_branch
    %1440 = sbr.rel (0) target = $region113
  $region112: #{run.1} parent=0 // pred_region
    _
  $region113: #{run.1} parent=0 // pred_fallthru
    _
  // Predicated region
  $region114: #{run.1} parent=0 // pred_check
    _
  $region115: #{run.1} parent=0 // pred_check_branch
    %1442 = sbr.rel (0) target = $region117
  $region116: #{run.1} parent=0 // pred_region
    _
  $region117: #{run.1} parent=0 // pred_fallthru
    _

</llo_original>
